<compile_context>
chip_gen: v5e
topology: v5e:2x2
jax: 0.10.0
libtpu: 0.0.40
codegen_flags: <defaults>
</compile_context>

<pallas_src>
import jax
import jax.numpy as jnp
from jax.experimental import pallas as pl
from jax.experimental.pallas import tpu as pltpu


def _round_up(x: int, m: int) -> int:
    return ((x + m - 1) // m) * m


def _make_decoder_kernel(n_inputs: int, n_hidden: int, use_softmax: bool):
    """Fused kernel: in-kernel input concat + softplus MLP + softmax/sigmoid head + clamp."""

    def kernel(*refs):
        o_ref = refs[-1]
        x_refs = refs[:n_inputs]
        idx = n_inputs
        w1_ref = refs[idx]
        b1_ref = refs[idx + 1]
        idx += 2
        hid_refs = refs[idx:idx + 2 * (n_hidden - 1)]
        idx += 2 * (n_hidden - 1)
        wp_ref = refs[idx]
        bp_ref = refs[idx + 1]

        # --- layer 1: concat inputs in VMEM (replaces torch.cat), single lane-dense dot ---
        if n_inputs == 1:
            x = x_refs[0][...]
        else:
            x = jnp.concatenate([r[...] for r in x_refs], axis=-1)
        z = jnp.dot(x.astype(jnp.bfloat16), w1_ref[...],
                    preferred_element_type=jnp.float32) + b1_ref[...]
        h = jax.nn.softplus(z)                           # f32 elementwise (v5e-safe)

        # --- hidden layers 2..n_hidden ---
        for j in range(n_hidden - 1):
            w = hid_refs[2 * j][...]
            b = hid_refs[2 * j + 1][...]
            z = jnp.dot(h.astype(jnp.bfloat16), w, preferred_element_type=jnp.float32) + b
            h = jax.nn.softplus(z)

        # --- head: logits over the real out_dim columns (no 128-padded slab) ---
        # TODO(synk): for very large reconstruction_dim / hidden widths on v7x (64 MiB VMEM),
        # N-tile Wp from HBM with an online softmax to bound resident VMEM.
        logits = jnp.dot(h.astype(jnp.bfloat16), wp_ref[...],
                         preferred_element_type=jnp.float32) + bp_ref[...]

        if use_softmax:
            m = jnp.max(logits, axis=-1, keepdims=True)
            e = jnp.exp(logits - m)
            denom = jnp.sum(e, axis=-1, keepdims=True)
            ps = e * pl.reciprocal(denom, approx=False)   # exact normalization, EUP slot
        else:
            # columns are pre-packed as (-z, +z) so sigmoid yields (1 - p, p) directly
            ps = jax.nn.sigmoid(logits)

        o_ref[...] = jnp.clip(ps, 1e-10, 1.0 - 1e-10).astype(o_ref.dtype)

    return kernel


def _tpu_vmem_capacity_bytes() -> int:
    try:
        return int(pltpu.get_tpu_info().vmem_capacity_bytes)
    except Exception:
        return 64 * 1024 * 1024   # conservative (v7x per-TC); safe on all generations


def _choose_block_b(B: int, block_b, two_cores: bool) -> int:
    b16 = _round_up(max(B, 1), 16)
    if block_b is None:
        block_b = 256 if two_cores else 1024   # big tiles on 128-MiB-VMEM chips
    block_b = max(16, min(int(block_b), b16))
    if two_cores and b16 > 16:
        # Guarantee >= 2 parallel grid steps so both v7x TensorCores get work.
        block_b = min(block_b, _round_up(pl.cdiv(b16, 2), 16))
    if block_b >= 256:
        block_b = (block_b // 128) * 128       # full 128-row MXU M passes
    return _round_up(block_b, 16)


def categorical_decoder_forward(inputs, params, reconstruction_dim, *, block_b=None):
    """inputs: list of (B, d_i). params: [(W, b), ...] hidden linears then the head linear."""
    n_inputs = len(inputs)
    input_dims = [int(x.shape[1]) for x in inputs]
    B = int(inputs[0].shape[0])
    n_hidden = len(params) - 1
    # TODO(synk): len(hidden_dims) == 0 (head applied directly to concatenated inputs) not handled.
    assert n_hidden >= 1, "kernel assumes at least one hidden layer"

    out_dim = reconstruction_dim if reconstruction_dim > 1 else 2

    # --- generation-aware tiling / VMEM budget ---
    vmem_cap = _tpu_vmem_capacity_bytes()
    two_cores = vmem_cap <= 64 * 1024 * 1024            # v7x-like: 2 TCs, 64 MiB per TC
    if vmem_cap >= 128 * 1024 * 1024:
        vmem_limit = 100 * 1024 * 1024                   # v5e/v6e: plenty of headroom
    else:
        vmem_limit = min(48 * 1024 * 1024, (vmem_cap * 3) // 4)

    block_b = _choose_block_b(B, block_b, two_cores)
    b_pad = _round_up(B, block_b)
    grid = (b_pad // block_b,)

    # Inputs keep their producer dtype (bf16 latents pass straight through; no wrapper cast
    # pass).  Batch is zero-padded to the tile and sliced back afterwards.
    xs = []
    for x in inputs:
        x = jnp.asarray(x)
        if b_pad != B:
            x = jnp.pad(x, ((0, b_pad - B), (0, 0)))
        xs.append(x)

    # --- weights: bf16 for the MXU, f32 biases, all fully resident across the grid ---
    w1, b1 = params[0]
    w1 = jnp.asarray(w1, jnp.float32)
    assert sum(input_dims) == int(w1.shape[0]), "sum(input_dims) must match W1 fan-in"
    weights = [w1.astype(jnp.bfloat16), jnp.asarray(b1, jnp.float32).reshape(1, -1)]
    for (w, b) in params[1:-1]:
        weights.append(jnp.asarray(w, jnp.float32).astype(jnp.bfloat16))
        weights.append(jnp.asarray(b, jnp.float32).reshape(1, -1))

    wp, bp = params[-1]
    wp = jnp.asarray(wp, jnp.float32)
    bp = jnp.asarray(bp, jnp.float32).reshape(-1)
    if reconstruction_dim > 1:
        wp_k = wp.astype(jnp.bfloat16)
        bp_k = bp.reshape(1, -1)
    else:
        # Pack (-w, +w) so the kernel's sigmoid directly produces (1 - p, p).
        wcol = wp[:, 0]
        wp_k = jnp.stack([-wcol, wcol], axis=1).astype(jnp.bfloat16)   # (H, 2)
        bp_k = jnp.stack([-bp[0], bp[0]]).reshape(1, 2)
    weights += [wp_k, bp_k]

    flat = list(xs) + weights
    kernel = _make_decoder_kernel(n_inputs, n_hidden, reconstruction_dim > 1)

    def build(single_buffer_weights: bool):
        w_kwargs = dict(pipeline_mode=pl.Buffered(1)) if single_buffer_weights else {}
        in_specs = [pl.BlockSpec((block_b, int(x.shape[1])), lambda i: (i, 0)) for x in xs]
        # Constant-index blocks are never re-fetched -> single buffer (halves resident VMEM).
        in_specs += [pl.BlockSpec(tuple(p.shape), lambda i: (0, 0), **w_kwargs)
                     for p in weights]
        # Output block spans the full (small) minor dim: contiguous HBM writeback of only
        # the real out_dim columns, no padded-slab slice pass in the wrapper.
        out_spec = pl.BlockSpec((block_b, out_dim), lambda i: (i, 0))
        return pl.pallas_call(
            kernel,
            out_shape=jax.ShapeDtypeStruct((b_pad, out_dim), jnp.float32),
            grid_spec=pltpu.PrefetchScalarGridSpec(
                num_scalar_prefetch=0,
                grid=grid,
                in_specs=in_specs,
                out_specs=out_spec,
            ),
            compiler_params=pltpu.CompilerParams(
                dimension_semantics=("parallel",),
                vmem_limit_bytes=int(vmem_limit),
            ),
        )

    try:
        y = build(True)(*flat)
    except Exception:
        # pl.Buffered(1) not accepted by this jax version -> default double-buffering for
        # the (tiny) resident weight blocks; everything else unchanged.
        y = build(False)(*flat)

    return y[:B] if b_pad != B else y


def _linear_init(key, fan_in, fan_out):
    """Deterministic init mimicking nn.Linear default: U(-1/sqrt(fan_in), 1/sqrt(fan_in))."""
    kw, kb = jax.random.split(key)
    bound = 1.0 / jnp.sqrt(jnp.float32(fan_in))
    w = jax.random.uniform(kw, (fan_in, fan_out), jnp.float32, -bound, bound)
    b = jax.random.uniform(kb, (fan_out,), jnp.float32, -bound, bound)
    return w, b


def _reference_forward(inputs, params, reconstruction_dim, *, bf16_matmul):
    """Plain-JAX reference; bf16_matmul=True matches the kernel's MXU precision."""
    def dot(a, w):
        w = jnp.asarray(w, jnp.float32)
        if bf16_matmul:
            return jnp.dot(a.astype(jnp.bfloat16), w.astype(jnp.bfloat16),
                           preferred_element_type=jnp.float32)
        return jnp.dot(a, w)

    x = jnp.concatenate([jnp.asarray(i, jnp.float32) for i in inputs], axis=1)
    h = x
    for (w, b) in params[:-1]:
        h = jax.nn.softplus(dot(h, w) + jnp.asarray(b, jnp.float32))
    wp, bp = params[-1]
    logits = dot(h, wp) + jnp.asarray(bp, jnp.float32)
    if reconstruction_dim > 1:
        ps = jax.nn.softmax(logits, axis=-1)
    else:
        p = jax.nn.sigmoid(logits)
        ps = jnp.concatenate([1.0 - p, p], axis=-1)
    return jnp.clip(ps, 1e-10, 1.0 - 1e-10)


if __name__ == "__main__":
    # Small config consistent with the module's constructor.
    input_dims = [16, 8]          # two latent inputs, concatenated along dim 1 (in-kernel)
    hidden_dims = [32, 32]        # MLP hidden stack (softplus)
    batch = 40                    # deliberately not a tile multiple -> exercises padding

    key = jax.random.PRNGKey(0)
    k_in, k_params = jax.random.split(key)
    in_keys = jax.random.split(k_in, len(input_dims))
    inputs = [jax.random.normal(in_keys[i], (batch, d), jnp.float32)
              for i, d in enumerate(input_dims)]

    for reconstruction_dim in (10, 1):     # softmax head and sigmoid (binary) head
        dims = [sum(input_dims)] + list(hidden_dims) + [reconstruction_dim]
        p_keys = jax.random.split(k_params, len(dims) - 1)
        params = [_linear_init(p_keys[i], dims[i], dims[i + 1]) for i in range(len(dims) - 1)]

        out = jax.block_until_ready(
            categorical_decoder_forward(inputs, params, reconstruction_dim))
        out_dim = reconstruction_dim if reconstruction_dim > 1 else 2
        assert out.shape == (batch, out_dim)

        ref_bf16 = _reference_forward(inputs, params, reconstruction_dim, bf16_matmul=True)
        ref_f32 = _reference_forward(inputs, params, reconstruction_dim, bf16_matmul=False)
        assert jnp.allclose(out, ref_bf16, rtol=5e-3, atol=5e-3), (
            f"mismatch vs precision-matched reference (recon={reconstruction_dim})")
        assert jnp.allclose(out, ref_f32, rtol=2e-2, atol=2e-2), (
            f"mismatch vs f32 reference (recon={reconstruction_dim})")
        assert jnp.allclose(out.sum(axis=-1), 1.0, atol=1e-3)

    print("KERNEL_OK")
</pallas_src>

<mosaic_0001>
module attributes {stable_mosaic.version = 11 : i64} {
  func.func @kernel(%arg0: i32, %arg1: memref<32x16xf32, #tpu.memory_space<vmem>>, %arg2: memref<32x8xf32, #tpu.memory_space<vmem>>, %arg3: memref<24x32xbf16, #tpu.memory_space<vmem>>, %arg4: memref<1x32xf32, #tpu.memory_space<vmem>>, %arg5: memref<32x32xbf16, #tpu.memory_space<vmem>>, %arg6: memref<1x32xf32, #tpu.memory_space<vmem>>, %arg7: memref<32x10xbf16, #tpu.memory_space<vmem>>, %arg8: memref<1x10xf32, #tpu.memory_space<vmem>>, %arg9: memref<32x10xf32, #tpu.memory_space<vmem>>) attributes {dimension_semantics = [#tpu.dimension_semantics<parallel>], iteration_bounds = array<i64: 2>, scalar_prefetch = 0 : i64, scratch_operands = 0 : i64, tpu.core_type = #tpu.core_type<tc>, window_params = [{transform_indices = @transform_0, window_bounds = array<i64: 32, 16>}, {transform_indices = @transform_1, window_bounds = array<i64: 32, 8>}, {pipeline_mode = #tpu.pipeline_mode<synchronous>, transform_indices = @transform_2, window_bounds = array<i64: 24, 32>}, {pipeline_mode = #tpu.pipeline_mode<synchronous>, transform_indices = @transform_3, window_bounds = array<i64: 1, 32>}, {pipeline_mode = #tpu.pipeline_mode<synchronous>, transform_indices = @transform_4, window_bounds = array<i64: 32, 32>}, {pipeline_mode = #tpu.pipeline_mode<synchronous>, transform_indices = @transform_5, window_bounds = array<i64: 1, 32>}, {pipeline_mode = #tpu.pipeline_mode<synchronous>, transform_indices = @transform_6, window_bounds = array<i64: 32, 10>}, {pipeline_mode = #tpu.pipeline_mode<synchronous>, transform_indices = @transform_7, window_bounds = array<i64: 1, 10>}, {transform_indices = @transform_8, window_bounds = array<i64: 32, 10>}]} {
    %c0 = arith.constant 0 : index
    %c0_0 = arith.constant 0 : index
    %0 = vector.load %arg1[%c0, %c0_0] : memref<32x16xf32, #tpu.memory_space<vmem>>, vector<32x16xf32>
    %c0_1 = arith.constant 0 : index
    %c0_2 = arith.constant 0 : index
    %1 = vector.load %arg2[%c0_1, %c0_2] : memref<32x8xf32, #tpu.memory_space<vmem>>, vector<32x8xf32>
    %2 = tpu.concatenate %0, %1 in 1 : vector<32x16xf32>, vector<32x8xf32> -> vector<32x24xf32>
    %3 = arith.truncf %2 : vector<32x24xf32> to vector<32x24xbf16>
    %c0_3 = arith.constant 0 : index
    %c0_4 = arith.constant 0 : index
    %4 = vector.load %arg3[%c0_3, %c0_4] : memref<24x32xbf16, #tpu.memory_space<vmem>>, vector<24x32xbf16>
    %cst = arith.constant dense<0.000000e+00> : vector<32x32xf32>
    %5 = tpu.matmul %3, %4, %cst {dimension_numbers = #tpu.dot_dimension_numbers<[1], [0], [0], [1], [0, 0, 1, 1], [], []>} : vector<32x24xbf16>, vector<24x32xbf16>, vector<32x32xf32> -> vector<32x32xf32>
    %c0_5 = arith.constant 0 : index
    %c0_6 = arith.constant 0 : index
    %6 = vector.load %arg4[%c0_5, %c0_6] : memref<1x32xf32, #tpu.memory_space<vmem>>, vector<1x32xf32>
    %7 = vector.broadcast %6 : vector<1x32xf32> to vector<32x32xf32>
    %8 = arith.addf %5, %7 : vector<32x32xf32>
    %cst_7 = arith.constant 0.000000e+00 : f32
    %9 = vector.broadcast %cst_7 : f32 to vector<32x32xf32>
    %10 = arith.maximumf %8, %9 : vector<32x32xf32>
    %11 = vector.broadcast %cst_7 : f32 to vector<32x32xf32>
    %12 = arith.subf %8, %11 : vector<32x32xf32>
    %13 = arith.cmpf one, %12, %12 : vector<32x32xf32>
    %14 = vector.broadcast %cst_7 : f32 to vector<32x32xf32>
    %15 = arith.addf %8, %14 : vector<32x32xf32>
    %16 = math.absf %12 : vector<32x32xf32>
    %cst_8 = arith.constant 0.000000e+00 : f32
    %17 = vector.broadcast %cst_8 : f32 to vector<32x32xf32>
    %18 = arith.subf %17, %16 : vector<32x32xf32>
    %19 = math.exp %18 : vector<32x32xf32>
    %20 = math.log1p %19 : vector<32x32xf32>
    %21 = arith.addf %10, %20 : vector<32x32xf32>
    %22 = arith.select %13, %15, %21 : vector<32x32xi1>, vector<32x32xf32>
    %c0_9 = arith.constant 0 : index
    %c0_10 = arith.constant 0 : index
    %23 = vector.load %arg5[%c0_9, %c0_10] : memref<32x32xbf16, #tpu.memory_space<vmem>>, vector<32x32xbf16>
    %c0_11 = arith.constant 0 : index
    %c0_12 = arith.constant 0 : index
    %24 = vector.load %arg6[%c0_11, %c0_12] : memref<1x32xf32, #tpu.memory_space<vmem>>, vector<1x32xf32>
    %25 = arith.truncf %22 : vector<32x32xf32> to vector<32x32xbf16>
    %cst_13 = arith.constant dense<0.000000e+00> : vector<32x32xf32>
    %26 = tpu.matmul %25, %23, %cst_13 {dimension_numbers = #tpu.dot_dimension_numbers<[1], [0], [0], [1], [0, 0, 1, 1], [], []>} : vector<32x32xbf16>, vector<32x32xbf16>, vector<32x32xf32> -> vector<32x32xf32>
    %27 = vector.broadcast %24 : vector<1x32xf32> to vector<32x32xf32>
    %28 = arith.addf %26, %27 : vector<32x32xf32>
    %cst_14 = arith.constant 0.000000e+00 : f32
    %29 = vector.broadcast %cst_14 : f32 to vector<32x32xf32>
    %30 = arith.maximumf %28, %29 : vector<32x32xf32>
    %31 = vector.broadcast %cst_14 : f32 to vector<32x32xf32>
    %32 = arith.subf %28, %31 : vector<32x32xf32>
    %33 = arith.cmpf one, %32, %32 : vector<32x32xf32>
    %34 = vector.broadcast %cst_14 : f32 to vector<32x32xf32>
    %35 = arith.addf %28, %34 : vector<32x32xf32>
    %36 = math.absf %32 : vector<32x32xf32>
    %cst_15 = arith.constant 0.000000e+00 : f32
    %37 = vector.broadcast %cst_15 : f32 to vector<32x32xf32>
    %38 = arith.subf %37, %36 : vector<32x32xf32>
    %39 = math.exp %38 : vector<32x32xf32>
    %40 = math.log1p %39 : vector<32x32xf32>
    %41 = arith.addf %30, %40 : vector<32x32xf32>
    %42 = arith.select %33, %35, %41 : vector<32x32xi1>, vector<32x32xf32>
    %43 = arith.truncf %42 : vector<32x32xf32> to vector<32x32xbf16>
    %c0_16 = arith.constant 0 : index
    %c0_17 = arith.constant 0 : index
    %44 = vector.load %arg7[%c0_16, %c0_17] : memref<32x10xbf16, #tpu.memory_space<vmem>>, vector<32x10xbf16>
    %cst_18 = arith.constant dense<0.000000e+00> : vector<32x10xf32>
    %45 = tpu.matmul %43, %44, %cst_18 {dimension_numbers = #tpu.dot_dimension_numbers<[1], [0], [0], [1], [0, 0, 1, 1], [], []>} : vector<32x32xbf16>, vector<32x10xbf16>, vector<32x10xf32> -> vector<32x10xf32>
    %c0_19 = arith.constant 0 : index
    %c0_20 = arith.constant 0 : index
    %46 = vector.load %arg8[%c0_19, %c0_20] : memref<1x10xf32, #tpu.memory_space<vmem>>, vector<1x10xf32>
    %47 = vector.broadcast %46 : vector<1x10xf32> to vector<32x10xf32>
    %48 = arith.addf %45, %47 : vector<32x10xf32>
    %cst_21 = arith.constant dense<0xFF800000> : vector<32xf32>
    %49 = vector.multi_reduction <maximumf>, %48, %cst_21 [1] : vector<32x10xf32> to vector<32xf32>
    %50 = vector.shape_cast %49 : vector<32xf32> to vector<32x1xf32>
    %51 = vector.broadcast %50 : vector<32x1xf32> to vector<32x10xf32>
    %52 = arith.subf %48, %51 : vector<32x10xf32>
    %53 = math.exp %52 : vector<32x10xf32>
    %cst_22 = arith.constant dense<0.000000e+00> : vector<32xf32>
    %54 = vector.multi_reduction <add>, %53, %cst_22 [1] : vector<32x10xf32> to vector<32xf32>
    %55 = vector.shape_cast %54 : vector<32xf32> to vector<32x1xf32>
    %56 = tpu.reciprocal %55 : vector<32x1xf32> -> vector<32x1xf32>
    %57 = vector.broadcast %56 : vector<32x1xf32> to vector<32x10xf32>
    %58 = arith.mulf %53, %57 : vector<32x10xf32>
    %cst_23 = arith.constant 1.000000e-10 : f32
    %cst_24 = arith.constant 1.000000e+00 : f32
    %59 = vector.broadcast %cst_23 : f32 to vector<32x10xf32>
    %60 = arith.maximumf %59, %58 : vector<32x10xf32>
    %61 = vector.broadcast %cst_24 : f32 to vector<32x10xf32>
    %62 = arith.minimumf %61, %60 : vector<32x10xf32>
    %c0_25 = arith.constant 0 : index
    %c0_26 = arith.constant 0 : index
    %63 = vector.load %arg9[%c0_25, %c0_26] : memref<32x10xf32, #tpu.memory_space<vmem>>, vector<32x10xf32>
    tpu.vector_store %arg9[%c0_25, %c0_26], %62 {strides = array<i32>} : memref<32x10xf32, #tpu.memory_space<vmem>>, vector<32x10xf32>,
    return
  }
  func.func @transform_0(%arg0: i32) -> (i32, i32) {
    %c0_i32 = arith.constant 0 : i32
    %c0_i32_0 = arith.constant 0 : i32
    return %arg0, %c0_i32 : i32, i32
  }
  func.func @transform_1(%arg0: i32) -> (i32, i32) {
    %c0_i32 = arith.constant 0 : i32
    %c0_i32_0 = arith.constant 0 : i32
    return %arg0, %c0_i32 : i32, i32
  }
  func.func @transform_2(%arg0: i32) -> (i32, i32) {
    %c0_i32 = arith.constant 0 : i32
    %c0_i32_0 = arith.constant 0 : i32
    %c0_i32_1 = arith.constant 0 : i32
    return %c0_i32, %c0_i32_0 : i32, i32
  }
  func.func @transform_3(%arg0: i32) -> (i32, i32) {
    %c0_i32 = arith.constant 0 : i32
    %c0_i32_0 = arith.constant 0 : i32
    %c0_i32_1 = arith.constant 0 : i32
    return %c0_i32, %c0_i32_0 : i32, i32
  }
  func.func @transform_4(%arg0: i32) -> (i32, i32) {
    %c0_i32 = arith.constant 0 : i32
    %c0_i32_0 = arith.constant 0 : i32
    %c0_i32_1 = arith.constant 0 : i32
    return %c0_i32, %c0_i32_0 : i32, i32
  }
  func.func @transform_5(%arg0: i32) -> (i32, i32) {
    %c0_i32 = arith.constant 0 : i32
    %c0_i32_0 = arith.constant 0 : i32
    %c0_i32_1 = arith.constant 0 : i32
    return %c0_i32, %c0_i32_0 : i32, i32
  }
  func.func @transform_6(%arg0: i32) -> (i32, i32) {
    %c0_i32 = arith.constant 0 : i32
    %c0_i32_0 = arith.constant 0 : i32
    %c0_i32_1 = arith.constant 0 : i32
    return %c0_i32, %c0_i32_0 : i32, i32
  }
  func.func @transform_7(%arg0: i32) -> (i32, i32) {
    %c0_i32 = arith.constant 0 : i32
    %c0_i32_0 = arith.constant 0 : i32
    %c0_i32_1 = arith.constant 0 : i32
    return %c0_i32, %c0_i32_0 : i32, i32
  }
  func.func @transform_8(%arg0: i32) -> (i32, i32) {
    %c0_i32 = arith.constant 0 : i32
    %c0_i32_0 = arith.constant 0 : i32
    return %arg0, %c0_i32 : i32, i32
  }
}

module attributes {stable_mosaic.version = 11 : i64} {
  func.func @kernel(%arg0: i32, %arg1: memref<32x16xf32, #tpu.memory_space<vmem>>, %arg2: memref<32x8xf32, #tpu.memory_space<vmem>>, %arg3: memref<24x32xbf16, #tpu.memory_space<vmem>>, %arg4: memref<1x32xf32, #tpu.memory_space<vmem>>, %arg5: memref<32x32xbf16, #tpu.memory_space<vmem>>, %arg6: memref<1x32xf32, #tpu.memory_space<vmem>>, %arg7: memref<32x10xbf16, #tpu.memory_space<vmem>>, %arg8: memref<1x10xf32, #tpu.memory_space<vmem>>, %arg9: memref<32x10xf32, #tpu.memory_space<vmem>>) attributes {dimension_semantics = [#tpu.dimension_semantics<parallel>], iteration_bounds = array<i64: 2>, scalar_prefetch = 0 : i64, scratch_operands = 0 : i64, tpu.core_type = #tpu.core_type<tc>, window_params = [{transform_indices = @transform_0, window_bounds = array<i64: 32, 16>}, {transform_indices = @transform_1, window_bounds = array<i64: 32, 8>}, {pipeline_mode = #tpu.pipeline_mode<synchronous>, transform_indices = @transform_2, window_bounds = array<i64: 24, 32>}, {pipeline_mode = #tpu.pipeline_mode<synchronous>, transform_indices = @transform_3, window_bounds = array<i64: 1, 32>}, {pipeline_mode = #tpu.pipeline_mode<synchronous>, transform_indices = @transform_4, window_bounds = array<i64: 32, 32>}, {pipeline_mode = #tpu.pipeline_mode<synchronous>, transform_indices = @transform_5, window_bounds = array<i64: 1, 32>}, {pipeline_mode = #tpu.pipeline_mode<synchronous>, transform_indices = @transform_6, window_bounds = array<i64: 32, 10>}, {pipeline_mode = #tpu.pipeline_mode<synchronous>, transform_indices = @transform_7, window_bounds = array<i64: 1, 10>}, {transform_indices = @transform_8, window_bounds = array<i64: 32, 10>}]} {
    %c0 = arith.constant 0 : index
    %c0_0 = arith.constant 0 : index
    %0 = vector.load %arg1[%c0, %c0_0] : memref<32x16xf32, #tpu.memory_space<vmem>>, vector<32x16xf32>
    %c0_1 = arith.constant 0 : index
    %c0_2 = arith.constant 0 : index
    %1 = vector.load %arg2[%c0_1, %c0_2] : memref<32x8xf32, #tpu.memory_space<vmem>>, vector<32x8xf32>
    %2 = tpu.concatenate %0, %1 in 1 : vector<32x16xf32>, vector<32x8xf32> -> vector<32x24xf32>
    %3 = arith.truncf %2 : vector<32x24xf32> to vector<32x24xbf16>
    %c0_3 = arith.constant 0 : index
    %c0_4 = arith.constant 0 : index
    %4 = vector.load %arg3[%c0_3, %c0_4] : memref<24x32xbf16, #tpu.memory_space<vmem>>, vector<24x32xbf16>
    %cst = arith.constant dense<0.000000e+00> : vector<32x32xf32>
    %5 = tpu.matmul %3, %4, %cst {dimension_numbers = #tpu.dot_dimension_numbers<[1], [0], [0], [1], [0, 0, 1, 1], [], []>} : vector<32x24xbf16>, vector<24x32xbf16>, vector<32x32xf32> -> vector<32x32xf32>
    %c0_5 = arith.constant 0 : index
    %c0_6 = arith.constant 0 : index
    %6 = vector.load %arg4[%c0_5, %c0_6] : memref<1x32xf32, #tpu.memory_space<vmem>>, vector<1x32xf32>
    %7 = vector.broadcast %6 : vector<1x32xf32> to vector<32x32xf32>
    %8 = arith.addf %5, %7 : vector<32x32xf32>
    %cst_7 = arith.constant 0.000000e+00 : f32
    %9 = vector.broadcast %cst_7 : f32 to vector<32x32xf32>
    %10 = arith.maximumf %8, %9 : vector<32x32xf32>
    %11 = vector.broadcast %cst_7 : f32 to vector<32x32xf32>
    %12 = arith.subf %8, %11 : vector<32x32xf32>
    %13 = arith.cmpf one, %12, %12 : vector<32x32xf32>
    %14 = vector.broadcast %cst_7 : f32 to vector<32x32xf32>
    %15 = arith.addf %8, %14 : vector<32x32xf32>
    %16 = math.absf %12 : vector<32x32xf32>
    %cst_8 = arith.constant 0.000000e+00 : f32
    %17 = vector.broadcast %cst_8 : f32 to vector<32x32xf32>
    %18 = arith.subf %17, %16 : vector<32x32xf32>
    %19 = math.exp %18 : vector<32x32xf32>
    %20 = math.log1p %19 : vector<32x32xf32>
    %21 = arith.addf %10, %20 : vector<32x32xf32>
    %22 = arith.select %13, %15, %21 : vector<32x32xi1>, vector<32x32xf32>
    %c0_9 = arith.constant 0 : index
    %c0_10 = arith.constant 0 : index
    %23 = vector.load %arg5[%c0_9, %c0_10] : memref<32x32xbf16, #tpu.memory_space<vmem>>, vector<32x32xbf16>
    %c0_11 = arith.constant 0 : index
    %c0_12 = arith.constant 0 : index
    %24 = vector.load %arg6[%c0_11, %c0_12] : memref<1x32xf32, #tpu.memory_space<vmem>>, vector<1x32xf32>
    %25 = arith.truncf %22 : vector<32x32xf32> to vector<32x32xbf16>
    %cst_13 = arith.constant dense<0.000000e+00> : vector<32x32xf32>
    %26 = tpu.matmul %25, %23, %cst_13 {dimension_numbers = #tpu.dot_dimension_numbers<[1], [0], [0], [1], [0, 0, 1, 1], [], []>} : vector<32x32xbf16>, vector<32x32xbf16>, vector<32x32xf32> -> vector<32x32xf32>
    %27 = vector.broadcast %24 : vector<1x32xf32> to vector<32x32xf32>
    %28 = arith.addf %26, %27 : vector<32x32xf32>
    %cst_14 = arith.constant 0.000000e+00 : f32
    %29 = vector.broadcast %cst_14 : f32 to vector<32x32xf32>
    %30 = arith.maximumf %28, %29 : vector<32x32xf32>
    %31 = vector.broadcast %cst_14 : f32 to vector<32x32xf32>
    %32 = arith.subf %28, %31 : vector<32x32xf32>
    %33 = arith.cmpf one, %32, %32 : vector<32x32xf32>
    %34 = vector.broadcast %cst_14 : f32 to vector<32x32xf32>
    %35 = arith.addf %28, %34 : vector<32x32xf32>
    %36 = math.absf %32 : vector<32x32xf32>
    %cst_15 = arith.constant 0.000000e+00 : f32
    %37 = vector.broadcast %cst_15 : f32 to vector<32x32xf32>
    %38 = arith.subf %37, %36 : vector<32x32xf32>
    %39 = math.exp %38 : vector<32x32xf32>
    %40 = math.log1p %39 : vector<32x32xf32>
    %41 = arith.addf %30, %40 : vector<32x32xf32>
    %42 = arith.select %33, %35, %41 : vector<32x32xi1>, vector<32x32xf32>
    %43 = arith.truncf %42 : vector<32x32xf32> to vector<32x32xbf16>
    %c0_16 = arith.constant 0 : index
    %c0_17 = arith.constant 0 : index
    %44 = vector.load %arg7[%c0_16, %c0_17] : memref<32x10xbf16, #tpu.memory_space<vmem>>, vector<32x10xbf16>
    %cst_18 = arith.constant dense<0.000000e+00> : vector<32x10xf32>
    %45 = tpu.matmul %43, %44, %cst_18 {dimension_numbers = #tpu.dot_dimension_numbers<[1], [0], [0], [1], [0, 0, 1, 1], [], []>} : vector<32x32xbf16>, vector<32x10xbf16>, vector<32x10xf32> -> vector<32x10xf32>
    %c0_19 = arith.constant 0 : index
    %c0_20 = arith.constant 0 : index
    %46 = vector.load %arg8[%c0_19, %c0_20] : memref<1x10xf32, #tpu.memory_space<vmem>>, vector<1x10xf32>
    %47 = vector.broadcast %46 : vector<1x10xf32> to vector<32x10xf32>
    %48 = arith.addf %45, %47 : vector<32x10xf32>
    %cst_21 = arith.constant dense<0xFF800000> : vector<32xf32>
    %49 = vector.multi_reduction <maximumf>, %48, %cst_21 [1] : vector<32x10xf32> to vector<32xf32>
    %50 = vector.shape_cast %49 : vector<32xf32> to vector<32x1xf32>
    %51 = vector.broadcast %50 : vector<32x1xf32> to vector<32x10xf32>
    %52 = arith.subf %48, %51 : vector<32x10xf32>
    %53 = math.exp %52 : vector<32x10xf32>
    %cst_22 = arith.constant dense<0.000000e+00> : vector<32xf32>
    %54 = vector.multi_reduction <add>, %53, %cst_22 [1] : vector<32x10xf32> to vector<32xf32>
    %55 = vector.shape_cast %54 : vector<32xf32> to vector<32x1xf32>
    %56 = tpu.reciprocal %55 : vector<32x1xf32> -> vector<32x1xf32>
    %57 = vector.broadcast %56 : vector<32x1xf32> to vector<32x10xf32>
    %58 = arith.mulf %53, %57 : vector<32x10xf32>
    %cst_23 = arith.constant 1.000000e-10 : f32
    %cst_24 = arith.constant 1.000000e+00 : f32
    %59 = vector.broadcast %cst_23 : f32 to vector<32x10xf32>
    %60 = arith.maximumf %59, %58 : vector<32x10xf32>
    %61 = vector.broadcast %cst_24 : f32 to vector<32x10xf32>
    %62 = arith.minimumf %61, %60 : vector<32x10xf32>
    %c0_25 = arith.constant 0 : index
    %c0_26 = arith.constant 0 : index
    %63 = vector.load %arg9[%c0_25, %c0_26] : memref<32x10xf32, #tpu.memory_space<vmem>>, vector<32x10xf32>
    tpu.vector_store %arg9[%c0_25, %c0_26], %62 {strides = array<i32>} : memref<32x10xf32, #tpu.memory_space<vmem>>, vector<32x10xf32>,
    return
  }
  func.func @transform_0(%arg0: i32) -> (i32, i32) {
    %c0_i32 = arith.constant 0 : i32
    %c0_i32_0 = arith.constant 0 : i32
    return %arg0, %c0_i32 : i32, i32
  }
  func.func @transform_1(%arg0: i32) -> (i32, i32) {
    %c0_i32 = arith.constant 0 : i32
    %c0_i32_0 = arith.constant 0 : i32
    return %arg0, %c0_i32 : i32, i32
  }
  func.func @transform_2(%arg0: i32) -> (i32, i32) {
    %c0_i32 = arith.constant 0 : i32
    %c0_i32_0 = arith.constant 0 : i32
    %c0_i32_1 = arith.constant 0 : i32
    return %c0_i32, %c0_i32_0 : i32, i32
  }
  func.func @transform_3(%arg0: i32) -> (i32, i32) {
    %c0_i32 = arith.constant 0 : i32
    %c0_i32_0 = arith.constant 0 : i32
    %c0_i32_1 = arith.constant 0 : i32
    return %c0_i32, %c0_i32_0 : i32, i32
  }
  func.func @transform_4(%arg0: i32) -> (i32, i32) {
    %c0_i32 = arith.constant 0 : i32
    %c0_i32_0 = arith.constant 0 : i32
    %c0_i32_1 = arith.constant 0 : i32
    return %c0_i32, %c0_i32_0 : i32, i32
  }
  func.func @transform_5(%arg0: i32) -> (i32, i32) {
    %c0_i32 = arith.constant 0 : i32
    %c0_i32_0 = arith.constant 0 : i32
    %c0_i32_1 = arith.constant 0 : i32
    return %c0_i32, %c0_i32_0 : i32, i32
  }
  func.func @transform_6(%arg0: i32) -> (i32, i32) {
    %c0_i32 = arith.constant 0 : i32
    %c0_i32_0 = arith.constant 0 : i32
    %c0_i32_1 = arith.constant 0 : i32
    return %c0_i32, %c0_i32_0 : i32, i32
  }
  func.func @transform_7(%arg0: i32) -> (i32, i32) {
    %c0_i32 = arith.constant 0 : i32
    %c0_i32_0 = arith.constant 0 : i32
    %c0_i32_1 = arith.constant 0 : i32
    return %c0_i32, %c0_i32_0 : i32, i32
  }
  func.func @transform_8(%arg0: i32) -> (i32, i32) {
    %c0_i32 = arith.constant 0 : i32
    %c0_i32_0 = arith.constant 0 : i32
    return %arg0, %c0_i32 : i32, i32
  }
}

</mosaic_0001>

<llo_original>
// kernel: tpu_custom_call.1
$region0: #{tpu_custom_call.1}
  #allocation0 [shape = 'u32[]', space=smem, size = 0x4, offset = 0x4, fixed_abs, tag = 'smem constant byte address 0x4 - core index']
  #allocation1 [shape = 'u32[72,128]{1,0:T(1,128)}', space=vmem, size = 0x9000, scoped, tag = 'internal scratch']
  %s0 = inlined_call_operand.vmem [shape: f32[64,16], index: 0, kind: input, shape index: {}]
  %s1 = inlined_call_operand.vmem [shape: f32[64,8], index: 1, kind: input, shape index: {}]
  %s2 = inlined_call_operand.vmem [shape: bf16[24,32], index: 2, kind: input, shape index: {}]
  %s3 = inlined_call_operand.vmem [shape: f32[1,32], index: 3, kind: input, shape index: {}]
  %s4 = inlined_call_operand.vmem [shape: bf16[32,32], index: 4, kind: input, shape index: {}]
  %s5 = inlined_call_operand.vmem [shape: f32[1,32], index: 5, kind: input, shape index: {}]
  %s6 = inlined_call_operand.vmem [shape: bf16[32,10], index: 6, kind: input, shape index: {}]
  %s7 = inlined_call_operand.vmem [shape: f32[1,10], index: 7, kind: input, shape index: {}]
  %s8 = inlined_call_operand.vmem [shape: f32[64,10], index: 8, kind: output, shape index: {}]
  %s9 = sld [smem:[#allocation0]]
  $region65: #{tpu_custom_call.1} parent=0
    _
  %s11 = ssub.s32 1, %s9
  %s12 = scalar_select 0, %s11, %s9
  loop: start=0, step=1, limit=4
  $region2: #{tpu_custom_call.1} parent=0 // loop_pre_header
    _
  $region3: #{tpu_custom_call.1} parent=0 // loop_header
    %s14 = sphi 0, %s18
    %p15 = scmp.ge.s32.totalorder %s14, 4
    %s24 = sphi 0, %s26
    %s27 = sphi 0, %s24
    %s28 = sphi 0, %s27
    %s44 = sphi 0, %s28
    %s50 = sphi 0, %s52
    %s53 = sphi 0, %s50
    %s54 = sphi 0, %s53
    %s70 = sphi 0, %s54
    %s74 = sphi 0, %s74
    %s76 = sphi 0, %s74
    %s77 = sphi 0, %s76
    %s91 = sphi 0, %s77
    %s95 = sphi 0, %s95
    %s97 = sphi 0, %s95
    %s98 = sphi 0, %s97
    %s112 = sphi 0, %s98
    %s116 = sphi 0, %s116
    %s118 = sphi 0, %s116
    %s119 = sphi 0, %s118
    %s133 = sphi 0, %s119
    %s137 = sphi 0, %s137
    %s139 = sphi 0, %s137
    %s140 = sphi 0, %s139
    %s154 = sphi 0, %s140
    %s158 = sphi 0, %s158
    %s160 = sphi 0, %s158
    %s161 = sphi 0, %s160
    %s175 = sphi 0, %s161
    %s179 = sphi 0, %s179
    %s181 = sphi 0, %s179
    %s182 = sphi 0, %s181
    %s196 = sphi 0, %s182
    %s202 = sphi 0, %s204
    %s205 = sphi 0, %s202
    %s206 = sphi 0, %s205
    %s222 = sphi 0, %s206
  $region4: #{tpu_custom_call.1} parent=0 // loop_header_branch
    %17 = sbr.rel (%p15) target = $region8
  $region5: #{tpu_custom_call.1} parent=0 // loop_body
    %s19 = ssub.s32 %s14, 1
    %s20 = ssub.s32 %s14, 2
    %s21 = sadd.s32 %s14, 1
    %s22 = ssub.s32 %s14, %s21
    %p23 = scmp.eq.s32.totalorder %s22, 0
    %s25 = sadd.s32 %s24, 1
    %s26 = scalar_select %p23, %s24, %s25
    %p29 = pneg %p23
    %p30 = scmp.eq.s32.totalorder %s14, 1
    %p31 = por %p29, %p30
    %p32 = scmp.ne.s32.totalorder %s24, %s27
    %p33 = scmp.eq.s32.totalorder %s14, 0
    %p34 = por %p32, %p33
    %p35 = scmp.ne.s32.totalorder %s24, %s27
    %p36 = scmp.eq.s32.totalorder %s19, 1
    %p37 = por %p35, %p36
    %p38 = scmp.ne.s32.totalorder %s27, %s28
    %p39 = scmp.eq.s32.totalorder %s19, 0
    %p40 = por %p38, %p39
    %p41 = scmp.ne.s32.totalorder %s27, %s28
    %p42 = scmp.eq.s32.totalorder %s20, 1
    %p43 = por %p41, %p42
    %p45 = scmp.ne.s32.totalorder %s28, %s44
    %p46 = scmp.eq.s32.totalorder %s20, 0
    %p47 = por %p45, %p46
    %s48 = ssub.s32 %s14, %s21
    %p49 = scmp.eq.s32.totalorder %s48, 0
    %s51 = sadd.s32 %s50, 1
    %s52 = scalar_select %p49, %s50, %s51
    %p55 = pneg %p49
    %p56 = scmp.eq.s32.totalorder %s14, 1
    %p57 = por %p55, %p56
    %p58 = scmp.ne.s32.totalorder %s50, %s53
    %p59 = scmp.eq.s32.totalorder %s14, 0
    %p60 = por %p58, %p59
    %p61 = scmp.ne.s32.totalorder %s50, %s53
    %p62 = scmp.eq.s32.totalorder %s19, 1
    %p63 = por %p61, %p62
    %p64 = scmp.ne.s32.totalorder %s53, %s54
    %p65 = scmp.eq.s32.totalorder %s19, 0
    %p66 = por %p64, %p65
    %p67 = scmp.ne.s32.totalorder %s53, %s54
    %p68 = scmp.eq.s32.totalorder %s20, 1
    %p69 = por %p67, %p68
    %p71 = scmp.ne.s32.totalorder %s54, %s70
    %p72 = scmp.eq.s32.totalorder %s20, 0
    %p73 = por %p71, %p72
    %s75 = sadd.s32 %s74, 1
    %p78 = scmp.eq.s32.totalorder %s14, 1
    %p79 = scmp.ne.s32.totalorder %s74, %s76
    %p80 = scmp.eq.s32.totalorder %s14, 0
    %p81 = por %p79, %p80
    %p82 = scmp.ne.s32.totalorder %s74, %s76
    %p83 = scmp.eq.s32.totalorder %s19, 1
    %p84 = por %p82, %p83
    %p85 = scmp.ne.s32.totalorder %s76, %s77
    %p86 = scmp.eq.s32.totalorder %s19, 0
    %p87 = por %p85, %p86
    %p88 = scmp.ne.s32.totalorder %s76, %s77
    %p89 = scmp.eq.s32.totalorder %s20, 1
    %p90 = por %p88, %p89
    %p92 = scmp.ne.s32.totalorder %s77, %s91
    %p93 = scmp.eq.s32.totalorder %s20, 0
    %p94 = por %p92, %p93
    %s96 = sadd.s32 %s95, 1
    %p99 = scmp.eq.s32.totalorder %s14, 1
    %p100 = scmp.ne.s32.totalorder %s95, %s97
    %p101 = scmp.eq.s32.totalorder %s14, 0
    %p102 = por %p100, %p101
    %p103 = scmp.ne.s32.totalorder %s95, %s97
    %p104 = scmp.eq.s32.totalorder %s19, 1
    %p105 = por %p103, %p104
    %p106 = scmp.ne.s32.totalorder %s97, %s98
    %p107 = scmp.eq.s32.totalorder %s19, 0
    %p108 = por %p106, %p107
    %p109 = scmp.ne.s32.totalorder %s97, %s98
    %p110 = scmp.eq.s32.totalorder %s20, 1
    %p111 = por %p109, %p110
    %p113 = scmp.ne.s32.totalorder %s98, %s112
    %p114 = scmp.eq.s32.totalorder %s20, 0
    %p115 = por %p113, %p114
    %s117 = sadd.s32 %s116, 1
    %p120 = scmp.eq.s32.totalorder %s14, 1
    %p121 = scmp.ne.s32.totalorder %s116, %s118
    %p122 = scmp.eq.s32.totalorder %s14, 0
    %p123 = por %p121, %p122
    %p124 = scmp.ne.s32.totalorder %s116, %s118
    %p125 = scmp.eq.s32.totalorder %s19, 1
    %p126 = por %p124, %p125
    %p127 = scmp.ne.s32.totalorder %s118, %s119
    %p128 = scmp.eq.s32.totalorder %s19, 0
    %p129 = por %p127, %p128
    %p130 = scmp.ne.s32.totalorder %s118, %s119
    %p131 = scmp.eq.s32.totalorder %s20, 1
    %p132 = por %p130, %p131
    %p134 = scmp.ne.s32.totalorder %s119, %s133
    %p135 = scmp.eq.s32.totalorder %s20, 0
    %p136 = por %p134, %p135
    %s138 = sadd.s32 %s137, 1
    %p141 = scmp.eq.s32.totalorder %s14, 1
    %p142 = scmp.ne.s32.totalorder %s137, %s139
    %p143 = scmp.eq.s32.totalorder %s14, 0
    %p144 = por %p142, %p143
    %p145 = scmp.ne.s32.totalorder %s137, %s139
    %p146 = scmp.eq.s32.totalorder %s19, 1
    %p147 = por %p145, %p146
    %p148 = scmp.ne.s32.totalorder %s139, %s140
    %p149 = scmp.eq.s32.totalorder %s19, 0
    %p150 = por %p148, %p149
    %p151 = scmp.ne.s32.totalorder %s139, %s140
    %p152 = scmp.eq.s32.totalorder %s20, 1
    %p153 = por %p151, %p152
    %p155 = scmp.ne.s32.totalorder %s140, %s154
    %p156 = scmp.eq.s32.totalorder %s20, 0
    %p157 = por %p155, %p156
    %s159 = sadd.s32 %s158, 1
    %p162 = scmp.eq.s32.totalorder %s14, 1
    %p163 = scmp.ne.s32.totalorder %s158, %s160
    %p164 = scmp.eq.s32.totalorder %s14, 0
    %p165 = por %p163, %p164
    %p166 = scmp.ne.s32.totalorder %s158, %s160
    %p167 = scmp.eq.s32.totalorder %s19, 1
    %p168 = por %p166, %p167
    %p169 = scmp.ne.s32.totalorder %s160, %s161
    %p170 = scmp.eq.s32.totalorder %s19, 0
    %p171 = por %p169, %p170
    %p172 = scmp.ne.s32.totalorder %s160, %s161
    %p173 = scmp.eq.s32.totalorder %s20, 1
    %p174 = por %p172, %p173
    %p176 = scmp.ne.s32.totalorder %s161, %s175
    %p177 = scmp.eq.s32.totalorder %s20, 0
    %p178 = por %p176, %p177
    %s180 = sadd.s32 %s179, 1
    %p183 = scmp.eq.s32.totalorder %s14, 1
    %p184 = scmp.ne.s32.totalorder %s179, %s181
    %p185 = scmp.eq.s32.totalorder %s14, 0
    %p186 = por %p184, %p185
    %p187 = scmp.ne.s32.totalorder %s179, %s181
    %p188 = scmp.eq.s32.totalorder %s19, 1
    %p189 = por %p187, %p188
    %p190 = scmp.ne.s32.totalorder %s181, %s182
    %p191 = scmp.eq.s32.totalorder %s19, 0
    %p192 = por %p190, %p191
    %p193 = scmp.ne.s32.totalorder %s181, %s182
    %p194 = scmp.eq.s32.totalorder %s20, 1
    %p195 = por %p193, %p194
    %p197 = scmp.ne.s32.totalorder %s182, %s196
    %p198 = scmp.eq.s32.totalorder %s20, 0
    %p199 = por %p197, %p198
    %s200 = ssub.s32 %s14, %s21
    %p201 = scmp.eq.s32.totalorder %s200, 0
    %s203 = sadd.s32 %s202, 1
    %s204 = scalar_select %p201, %s202, %s203
    %p207 = pneg %p201
    %p208 = scmp.eq.s32.totalorder %s14, 1
    %p209 = por %p207, %p208
    %p210 = scmp.ne.s32.totalorder %s202, %s205
    %p211 = scmp.eq.s32.totalorder %s14, 0
    %p212 = por %p210, %p211
    %p213 = scmp.ne.s32.totalorder %s202, %s205
    %p214 = scmp.eq.s32.totalorder %s19, 1
    %p215 = por %p213, %p214
    %p216 = scmp.ne.s32.totalorder %s205, %s206
    %p217 = scmp.eq.s32.totalorder %s19, 0
    %p218 = por %p216, %p217
    %p219 = scmp.ne.s32.totalorder %s205, %s206
    %p220 = scmp.eq.s32.totalorder %s20, 1
    %p221 = por %p219, %p220
    %p223 = scmp.ne.s32.totalorder %s206, %s222
    %p224 = scmp.eq.s32.totalorder %s20, 0
    %p225 = por %p223, %p224
    %p226 = scmp.le.s32.totalorder 1, %s14
    %p227 = scmp.lt.s32.totalorder %s14, 3
    %p228 = pnand %p226, %p227
    %p229 = pneg %p228
    // Predicated region
    $region9: #{tpu_custom_call.1} parent=5 // pred_check
      _
    $region10: #{tpu_custom_call.1} parent=5 // pred_check_branch
      %231 = sbr.rel (%p228) target = $region12
    $region11: #{tpu_custom_call.1} parent=5 // pred_region
      %s232 = ssub.s32 %s14, 1
      // Predicated region
      $region13: #{tpu_custom_call.1} parent=11 // pred_check
        %p233 = pneg %p87
      $region14: #{tpu_custom_call.1} parent=11 // pred_check_branch
        %235 = sbr.rel (%p233) target = $region16
      $region15: #{tpu_custom_call.1} parent=11 // pred_region
        _
      $region16: #{tpu_custom_call.1} parent=11 // pred_fallthru
        _
      // Predicated region
      $region17: #{tpu_custom_call.1} parent=11 // pred_check
        %p236 = pneg %p108
      $region18: #{tpu_custom_call.1} parent=11 // pred_check_branch
        %238 = sbr.rel (%p236) target = $region20
      $region19: #{tpu_custom_call.1} parent=11 // pred_region
        _
      $region20: #{tpu_custom_call.1} parent=11 // pred_fallthru
        _
      // Predicated region
      $region21: #{tpu_custom_call.1} parent=11 // pred_check
        %p239 = pneg %p129
      $region22: #{tpu_custom_call.1} parent=11 // pred_check_branch
        %241 = sbr.rel (%p239) target = $region24
      $region23: #{tpu_custom_call.1} parent=11 // pred_region
        _
      $region24: #{tpu_custom_call.1} parent=11 // pred_fallthru
        _
      // Predicated region
      $region25: #{tpu_custom_call.1} parent=11 // pred_check
        %p242 = pneg %p150
      $region26: #{tpu_custom_call.1} parent=11 // pred_check_branch
        %244 = sbr.rel (%p242) target = $region28
      $region27: #{tpu_custom_call.1} parent=11 // pred_region
        _
      $region28: #{tpu_custom_call.1} parent=11 // pred_fallthru
        _
      // Predicated region
      $region29: #{tpu_custom_call.1} parent=11 // pred_check
        %p245 = pneg %p171
      $region30: #{tpu_custom_call.1} parent=11 // pred_check_branch
        %247 = sbr.rel (%p245) target = $region32
      $region31: #{tpu_custom_call.1} parent=11 // pred_region
        _
      $region32: #{tpu_custom_call.1} parent=11 // pred_fallthru
        _
      // Predicated region
      $region33: #{tpu_custom_call.1} parent=11 // pred_check
        %p248 = pneg %p192
      $region34: #{tpu_custom_call.1} parent=11 // pred_check_branch
        %250 = sbr.rel (%p248) target = $region36
      $region35: #{tpu_custom_call.1} parent=11 // pred_region
        _
      $region36: #{tpu_custom_call.1} parent=11 // pred_fallthru
        _
    $region12: #{tpu_custom_call.1} parent=5 // pred_fallthru
      _
    %p251 = scmp.lt.s32.totalorder %s14, 2
    // Predicated region
    $region37: #{tpu_custom_call.1} parent=5 // pred_check
      %p252 = pneg %p251
    $region38: #{tpu_custom_call.1} parent=5 // pred_check_branch
      %254 = sbr.rel (%p252) target = $region40
    $region39: #{tpu_custom_call.1} parent=5 // pred_region
      // Predicated region
      $region41: #{tpu_custom_call.1} parent=39 // pred_check
        %p255 = pneg %p34
      $region42: #{tpu_custom_call.1} parent=39 // pred_check_branch
        %257 = sbr.rel (%p255) target = $region44
      $region43: #{tpu_custom_call.1} parent=39 // pred_region
        %s258 = smul.u32 4, %s14
        %p259 = scmp.lt.s32.totalorder %s258, 7
        %s260 = scalar_select %p259, %s258, 7
        %s261 = smul.addr %s260, 8
        %s262 = scalar_lea.vmem %s0, %s261
        %s263 = smul.u32 4, %s14
      $region44: #{tpu_custom_call.1} parent=39 // pred_fallthru
        _
      // Predicated region
      $region45: #{tpu_custom_call.1} parent=39 // pred_check
        %p264 = pneg %p60
      $region46: #{tpu_custom_call.1} parent=39 // pred_check_branch
        %266 = sbr.rel (%p264) target = $region48
      $region47: #{tpu_custom_call.1} parent=39 // pred_region
        %s267 = smul.u32 4, %s14
        %p268 = scmp.lt.s32.totalorder %s267, 7
        %s269 = scalar_select %p268, %s267, 7
        %s270 = smul.addr %s269, 8
        %s271 = scalar_lea.vmem %s1, %s270
        %s272 = smul.u32 4, %s14
      $region48: #{tpu_custom_call.1} parent=39 // pred_fallthru
        _
    $region40: #{tpu_custom_call.1} parent=5 // pred_fallthru
      _
    %p273 = scmp.le.s32.totalorder 1, %s14
    %p274 = scmp.lt.s32.totalorder %s14, 3
    %p275 = pnand %p273, %p274
    %p276 = pneg %p275
    // Predicated region
    $region49: #{tpu_custom_call.1} parent=5 // pred_check
      _
    $region50: #{tpu_custom_call.1} parent=5 // pred_check_branch
      %278 = sbr.rel (%p275) target = $region52
    $region51: #{tpu_custom_call.1} parent=5 // pred_region
      %s279 = ssub.s32 %s14, 1
      %s280 = smul.u32 4, %s19
      %p281 = scmp.lt.s32.totalorder %s280, 7
      %s282 = scalar_select %p281, %s280, 7
      %s283 = smul.addr %s282, 8
      %s284 = scalar_lea.vmem %s0, %s283
      %p285 = pneg %p40
      %p286 = pneg %p37
      %s287 = smul.u32 4, %s19
      %p288 = scmp.lt.s32.totalorder %s287, 7
      %s289 = scalar_select %p288, %s287, 7
      %s290 = smul.addr %s289, 8
      %s291 = scalar_lea.vmem %s1, %s290
      %p292 = pneg %p66
      %p293 = pneg %p63
      %p294 = pneg %p87
      %p295 = pneg %p84
      %p296 = pneg %p108
      %p297 = pneg %p105
      %p298 = pneg %p129
      %p299 = pneg %p126
      %p300 = pneg %p150
      %p301 = pneg %p147
      %p302 = pneg %p171
      %p303 = pneg %p168
      %p304 = pneg %p192
      %p305 = pneg %p189
      %p306 = pneg %p218
      %p307 = pneg %p215
      %s308 = smul.u32 4, %s19
      %p309 = scmp.lt.s32.totalorder %s308, 7
      %s310 = scalar_select %p309, %s308, 7
      %s311 = smul.addr %s310, 8
      %s312 = scalar_lea.vmem %s8, %s311
      %s313 = smul.u32 4, %s19
      %p314 = scmp.lt.s32.totalorder %s313, 7
      %s315 = scalar_select %p314, %s313, 7
      %s316 = smul.addr %s315, 8
      %s317 = scalar_lea.vmem %s0, %s316
      %s318 = smul.u32 4, %s19
      %s319 = smul.u32 4, %s19
      %p320 = scmp.lt.s32.totalorder %s319, 7
      %s321 = scalar_select %p320, %s319, 7
      %s322 = smul.addr %s321, 8
      %s323 = scalar_lea.vmem %s1, %s322
      %s324 = smul.u32 4, %s19
      %s325 = smul.u32 4, %s19
      %p326 = scmp.lt.s32.totalorder %s325, 7
      %s327 = scalar_select %p326, %s325, 7
      %s328 = smul.addr %s327, 8
      %s329 = scalar_lea.vmem %s8, %s328
      %s330 = smul.u32 4, %s19
      %v332 = vld [vmem:[%s317] sm:$0xff]
      %v333 = vld [vmem:[%s317 + $0x8] sm:$0xff]
      %v334 = vld [vmem:[%s317 + $0x10] sm:$0xff]
      %v335 = vld [vmem:[%s317 + $0x18] sm:$0xff]
      %v336 = vld [vmem:[%s323] sm:$0xff]
      %v337 = vld [vmem:[%s323 + $0x8] sm:$0xff]
      %v338 = vld [vmem:[%s323 + $0x10] sm:$0xff]
      %v339 = vld [vmem:[%s323 + $0x18] sm:$0xff]
      %344 = vrot.lane.b32.xlu0 %v336, 16
      %v345 = vpop.permute.xlu0 %344
      %346 = vrot.lane.b32.xlu0 %v337, 16
      %v347 = vpop.permute.xlu0 %346
      %348 = vrot.lane.b32.xlu0 %v338, 16
      %v349 = vpop.permute.xlu0 %348
      %350 = vrot.lane.b32.xlu0 %v339, 16
      %v351 = vpop.permute.xlu0 %350
      %vm356 = vcmask 130048
      %v357 = vsel %vm356, %v332, %v345
      %v358 = vsel %vm356, %v333, %v347
      %v359 = vsel %vm356, %v334, %v349
      %v360 = vsel %vm356, %v335, %v351
      %v361 = vpack.c.bf16 %v358, %v357
      %v362 = vpack.c.bf16 %v360, %v359
      %v363 = vld [vmem:[%s2] sm:$0xf]
      %v364 = vld [vmem:[%s2 + $0x4] sm:$0xf]
      %v365 = vld [vmem:[%s2 + $0x8] sm:$0xf]
      %v366 = vld [vmem:[%s3] sm:$0x1]
      %v368 = vperm.slane %v366, 0
      %v373 = vunpack.c.l.b16 %v363
      %v374 = vunpack.c.l.b16 %v364
      %v375 = vunpack.c.l.b16 %v365
      %v376 = vpack.c.b16 %v374, %v373
      %v377 = vpack.c.b16 %v375, %v375
      %vm379 = vcmask 195584
      %v381 = vsel %vm379, %v361, 0
      %v384 = vsel %vm379, %v362, 0
      %vm386 = vcmask 1043456
      %v388 = vsel %vm386, %v377, 0
      %390 = vmatpush.bf16.msra.mxu0 0
      %391 = vmatpush.bf16.msra.mxu0 0
      %392 = vmatpush.bf16.msra.mxu0 0
      %393 = vmatpush.bf16.msra.mxu0 0
      %394 = vmatpush.bf16.msra.mxu0 0
      %395 = vmatpush.bf16.msra.mxu0 0
      %396 = vmatpush.bf16.msra.mxu0 %v388
      %397 = vmatpush.bf16.msra.mxu0 %v376
      %398 = vmatmul.bf16.gmra.mxu0 %v381
      %v399 = vpop.f32.mrf.mxu0
      %v400 = vadd.f32 %v368, %v399
      %v401 = vpop.f32.mrf.mxu0
      %v402 = vadd.f32 %v368, %v401
      %403 = vmatmul.bf16.gmra.mxu0 %v384
      %v404 = vpop.f32.mrf.mxu0
      %v405 = vadd.f32 %v368, %v404
      %v406 = vpop.f32.mrf.mxu0
      %v407 = vadd.f32 %v368, %v406
      %408 = vdwg.mxu0
      %v409 = vmax.f32 %v400, 0.0
      %v410 = vmax.f32 %v402, 0.0
      %v411 = vmax.f32 %v405, 0.0
      %v412 = vmax.f32 %v407, 0.0
      %vm413 = vcmp.ne.f32.partialorder %v400, %v400
      %vm414 = vcmp.ne.f32.partialorder %v402, %v402
      %vm415 = vcmp.ne.f32.partialorder %v405, %v405
      %vm416 = vcmp.ne.f32.partialorder %v407, %v407
      %v417 = vadd.f32 %v400, 0.0
      %v418 = vadd.f32 %v402, 0.0
      %v419 = vadd.f32 %v405, 0.0
      %v420 = vadd.f32 %v407, 0.0
      %v421 = vand.u32 2147483647, %v400
      %v422 = vand.u32 2147483647, %v402
      %v423 = vand.u32 2147483647, %v405
      %v424 = vand.u32 2147483647, %v407
      %v425 = vsub.f32 0.0, %v421
      %v426 = vsub.f32 0.0, %v422
      %v427 = vsub.f32 0.0, %v423
      %v428 = vsub.f32 0.0, %v424
      %v429 = vmul.f32 %v425, 1.442695
      %v430 = vpow.pop %v429
      %v431 = vmul.f32 %v426, 1.442695
      %v432 = vpow.pop %v431
      %v433 = vmul.f32 %v427, 1.442695
      %v434 = vpow.pop %v433
      %v435 = vmul.f32 %v428, 1.442695
      %v436 = vpow.pop %v435
      %v437 = vadd.f32 %v430, 1.0
      %v438 = vlog2.pop %v437
      %v439 = vmul.f32 %v438, 0.6931472
      %v440 = vmul.f32 -0.5, %v430
      %v441 = vadd.f32 %v440, 1.0
      %v442 = vmul.f32 %v441, %v430
      %v443 = vand.u32 2147483647, %v430
      %vm444 = vcmp.lt.f32.partialorder %v443, 0.0004427343
      %v445 = vsel %vm444, %v442, %v439
      %v446 = vadd.f32 %v432, 1.0
      %v447 = vlog2.pop %v446
      %v448 = vmul.f32 %v447, 0.6931472
      %v449 = vmul.f32 -0.5, %v432
      %v450 = vadd.f32 %v449, 1.0
      %v451 = vmul.f32 %v450, %v432
      %v452 = vand.u32 2147483647, %v432
      %vm453 = vcmp.lt.f32.partialorder %v452, 0.0004427343
      %v454 = vsel %vm453, %v451, %v448
      %v455 = vadd.f32 %v434, 1.0
      %v456 = vlog2.pop %v455
      %v457 = vmul.f32 %v456, 0.6931472
      %v458 = vmul.f32 -0.5, %v434
      %v459 = vadd.f32 %v458, 1.0
      %v460 = vmul.f32 %v459, %v434
      %v461 = vand.u32 2147483647, %v434
      %vm462 = vcmp.lt.f32.partialorder %v461, 0.0004427343
      %v463 = vsel %vm462, %v460, %v457
      %v464 = vadd.f32 %v436, 1.0
      %v465 = vlog2.pop %v464
      %v466 = vmul.f32 %v465, 0.6931472
      %v467 = vmul.f32 -0.5, %v436
      %v468 = vadd.f32 %v467, 1.0
      %v469 = vmul.f32 %v468, %v436
      %v470 = vand.u32 2147483647, %v436
      %vm471 = vcmp.lt.f32.partialorder %v470, 0.0004427343
      %v472 = vsel %vm471, %v469, %v466
      %v473 = vadd.f32 %v409, %v445
      %v474 = vadd.f32 %v410, %v454
      %v475 = vadd.f32 %v411, %v463
      %v476 = vadd.f32 %v412, %v472
      %v477 = vsel %vm413, %v417, %v473
      %v478 = vsel %vm414, %v418, %v474
      %v479 = vsel %vm415, %v419, %v475
      %v480 = vsel %vm416, %v420, %v476
      %v481 = vld [vmem:[%s4] sm:$0xf]
      %v482 = vld [vmem:[%s4 + $0x4] sm:$0xf]
      %v483 = vld [vmem:[%s4 + $0x8] sm:$0xf]
      %v484 = vld [vmem:[%s4 + $0xc] sm:$0xf]
      %v485 = vld [vmem:[%s5] sm:$0x1]
      %v486 = vpack.c.bf16 %v478, %v477
      %v487 = vpack.c.bf16 %v480, %v479
      %v489 = vperm.slane %v485, 0
      %v495 = vunpack.c.l.b16 %v481
      %v496 = vunpack.c.l.b16 %v482
      %v497 = vunpack.c.l.b16 %v483
      %v498 = vunpack.c.l.b16 %v484
      %v499 = vpack.c.b16 %v496, %v495
      %v500 = vpack.c.b16 %v498, %v497
      %vm503 = vcmask 261120
      %v505 = vsel %vm503, %v486, 0
      %v508 = vsel %vm503, %v487, 0
      %510 = vmatpush.bf16.msra.mxu0 0
      %511 = vmatpush.bf16.msra.mxu0 0
      %512 = vmatpush.bf16.msra.mxu0 0
      %513 = vmatpush.bf16.msra.mxu0 0
      %514 = vmatpush.bf16.msra.mxu0 0
      %515 = vmatpush.bf16.msra.mxu0 0
      %516 = vmatpush.bf16.msra.mxu0 %v500
      %517 = vmatpush.bf16.msra.mxu0 %v499
      %518 = vmatmul.bf16.gmra.mxu0 %v505
      %v519 = vpop.f32.mrf.mxu0
      %v520 = vadd.f32 %v489, %v519
      %v521 = vpop.f32.mrf.mxu0
      %v522 = vadd.f32 %v489, %v521
      %523 = vmatmul.bf16.gmra.mxu0 %v508
      %v524 = vpop.f32.mrf.mxu0
      %v525 = vadd.f32 %v489, %v524
      %v526 = vpop.f32.mrf.mxu0
      %v527 = vadd.f32 %v489, %v526
      %528 = vdwg.mxu0
      %v529 = vmax.f32 %v520, 0.0
      %v530 = vmax.f32 %v522, 0.0
      %v531 = vmax.f32 %v525, 0.0
      %v532 = vmax.f32 %v527, 0.0
      %vm533 = vcmp.ne.f32.partialorder %v520, %v520
      %vm534 = vcmp.ne.f32.partialorder %v522, %v522
      %vm535 = vcmp.ne.f32.partialorder %v525, %v525
      %vm536 = vcmp.ne.f32.partialorder %v527, %v527
      %v537 = vadd.f32 %v520, 0.0
      %v538 = vadd.f32 %v522, 0.0
      %v539 = vadd.f32 %v525, 0.0
      %v540 = vadd.f32 %v527, 0.0
      %v541 = vand.u32 2147483647, %v520
      %v542 = vand.u32 2147483647, %v522
      %v543 = vand.u32 2147483647, %v525
      %v544 = vand.u32 2147483647, %v527
      %v545 = vsub.f32 0.0, %v541
      %v546 = vsub.f32 0.0, %v542
      %v547 = vsub.f32 0.0, %v543
      %v548 = vsub.f32 0.0, %v544
      %v549 = vmul.f32 %v545, 1.442695
      %v550 = vpow.pop %v549
      %v551 = vmul.f32 %v546, 1.442695
      %v552 = vpow.pop %v551
      %v553 = vmul.f32 %v547, 1.442695
      %v554 = vpow.pop %v553
      %v555 = vmul.f32 %v548, 1.442695
      %v556 = vpow.pop %v555
      %v557 = vadd.f32 %v550, 1.0
      %v558 = vlog2.pop %v557
      %v559 = vmul.f32 %v558, 0.6931472
      %v560 = vmul.f32 -0.5, %v550
      %v561 = vadd.f32 %v560, 1.0
      %v562 = vmul.f32 %v561, %v550
      %v563 = vand.u32 2147483647, %v550
      %vm564 = vcmp.lt.f32.partialorder %v563, 0.0004427343
      %v565 = vsel %vm564, %v562, %v559
      %v566 = vadd.f32 %v552, 1.0
      %v567 = vlog2.pop %v566
      %v568 = vmul.f32 %v567, 0.6931472
      %v569 = vmul.f32 -0.5, %v552
      %v570 = vadd.f32 %v569, 1.0
      %v571 = vmul.f32 %v570, %v552
      %v572 = vand.u32 2147483647, %v552
      %vm573 = vcmp.lt.f32.partialorder %v572, 0.0004427343
      %v574 = vsel %vm573, %v571, %v568
      %v575 = vadd.f32 %v554, 1.0
      %v576 = vlog2.pop %v575
      %v577 = vmul.f32 %v576, 0.6931472
      %v578 = vmul.f32 -0.5, %v554
      %v579 = vadd.f32 %v578, 1.0
      %v580 = vmul.f32 %v579, %v554
      %v581 = vand.u32 2147483647, %v554
      %vm582 = vcmp.lt.f32.partialorder %v581, 0.0004427343
      %v583 = vsel %vm582, %v580, %v577
      %v584 = vadd.f32 %v556, 1.0
      %v585 = vlog2.pop %v584
      %v586 = vmul.f32 %v585, 0.6931472
      %v587 = vmul.f32 -0.5, %v556
      %v588 = vadd.f32 %v587, 1.0
      %v589 = vmul.f32 %v588, %v556
      %v590 = vand.u32 2147483647, %v556
      %vm591 = vcmp.lt.f32.partialorder %v590, 0.0004427343
      %v592 = vsel %vm591, %v589, %v586
      %v593 = vadd.f32 %v529, %v565
      %v594 = vadd.f32 %v530, %v574
      %v595 = vadd.f32 %v531, %v583
      %v596 = vadd.f32 %v532, %v592
      %v597 = vsel %vm533, %v537, %v593
      %v598 = vsel %vm534, %v538, %v594
      %v599 = vsel %vm535, %v539, %v595
      %v600 = vsel %vm536, %v540, %v596
      %v601 = vpack.c.bf16 %v598, %v597
      %v602 = vpack.c.bf16 %v600, %v599
      %v603 = vld [vmem:[%s6] sm:$0xf]
      %v604 = vld [vmem:[%s6 + $0x4] sm:$0xf]
      %v605 = vld [vmem:[%s6 + $0x8] sm:$0xf]
      %v606 = vld [vmem:[%s6 + $0xc] sm:$0xf]
      %v607 = vld [vmem:[%s7] sm:$0x1]
      %v609 = vperm.slane %v607, 0
      %v615 = vunpack.c.l.b16 %v603
      %v616 = vunpack.c.l.b16 %v604
      %v617 = vunpack.c.l.b16 %v605
      %v618 = vunpack.c.l.b16 %v606
      %v619 = vpack.c.b16 %v616, %v615
      %v620 = vpack.c.b16 %v618, %v617
      %v624 = vsel %vm503, %v601, 0
      %v627 = vsel %vm503, %v602, 0
      %629 = vmatpush.bf16.msra.mxu0 0
      %630 = vmatpush.bf16.msra.mxu0 0
      %631 = vmatpush.bf16.msra.mxu0 0
      %632 = vmatpush.bf16.msra.mxu0 0
      %633 = vmatpush.bf16.msra.mxu0 0
      %634 = vmatpush.bf16.msra.mxu0 0
      %635 = vmatpush.bf16.msra.mxu0 %v620
      %636 = vmatpush.bf16.msra.mxu0 %v619
      %637 = vmatmul.bf16.gmra.mxu0 %v624
      %v638 = vpop.f32.mrf.mxu0
      %v639 = vadd.f32 %v609, %v638
      %v640 = vpop.f32.mrf.mxu0
      %v641 = vadd.f32 %v609, %v640
      %642 = vmatmul.bf16.gmra.mxu0 %v627
      %v643 = vpop.f32.mrf.mxu0
      %v644 = vadd.f32 %v609, %v643
      %v645 = vpop.f32.mrf.mxu0
      %v646 = vadd.f32 %v609, %v645
      %647 = vdwg.mxu0
      %vm648 = vcmask 80896
      %v649 = vsel %vm648, %v639, -inf
      %650 = vmax.xlane.f32.xlu0 %v649
      %v651 = vpop.xlane.xlu0 %650
      %v652 = vsel %vm648, %v641, -inf
      %653 = vmax.xlane.f32.xlu0 %v652
      %v654 = vpop.xlane.xlu0 %653
      %v655 = vsel %vm648, %v644, -inf
      %656 = vmax.xlane.f32.xlu0 %v655
      %v657 = vpop.xlane.xlu0 %656
      %v658 = vsel %vm648, %v646, -inf
      %659 = vmax.xlane.f32.xlu0 %v658
      %v660 = vpop.xlane.xlu0 %659
      %v661 = vsub.f32 %v639, %v651
      %v662 = vsub.f32 %v641, %v654
      %v663 = vsub.f32 %v644, %v657
      %v664 = vsub.f32 %v646, %v660
      %v665 = vmul.f32 %v661, 1.442695
      %v666 = vpow.pop %v665
      %v667 = vmul.f32 %v662, 1.442695
      %v668 = vpow.pop %v667
      %v669 = vmul.f32 %v663, 1.442695
      %v670 = vpow.pop %v669
      %v671 = vmul.f32 %v664, 1.442695
      %v672 = vpow.pop %v671
      %v673 = vsel %vm648, %v666, 0.0
      %674 = vadd.xlane.f32.xlu0 %v673
      %v675 = vpop.xlane.xlu0 %674
      %v676 = vsel %vm648, %v668, 0.0
      %677 = vadd.xlane.f32.xlu0 %v676
      %v678 = vpop.xlane.xlu0 %677
      %v679 = vsel %vm648, %v670, 0.0
      %680 = vadd.xlane.f32.xlu0 %v679
      %v681 = vpop.xlane.xlu0 %680
      %v682 = vsel %vm648, %v672, 0.0
      %683 = vadd.xlane.f32.xlu0 %v682
      %v684 = vpop.xlane.xlu0 %683
      %v685 = vrcp.pop %v675
      %v686 = vmul.f32 %v675, %v685
      %v687 = vsub.f32 1.0, %v686
      %v688 = vmul.f32 %v685, %v687
      %v689 = vadd.f32 %v685, %v688
      %vm690 = vweird.f32 %v675
      %vm691 = vweird.f32 %v685
      %vm692 = vmor %vm690, %vm691
      %v693 = vsel %vm692, %v685, %v689
      %v694 = vand.u32 2147483647, %v675
      %vm695 = vcmp.eq.f32.partialorder %v694, 8.507059e+37
      %v696 = vand.u32 %v675, 2147483648
      %v697 = vor.u32 1.1754944e-38, %v696
      %v698 = vsel %vm695, %v697, %v693
      %v699 = vrcp.pop %v678
      %v700 = vmul.f32 %v678, %v699
      %v701 = vsub.f32 1.0, %v700
      %v702 = vmul.f32 %v699, %v701
      %v703 = vadd.f32 %v699, %v702
      %vm704 = vweird.f32 %v678
      %vm705 = vweird.f32 %v699
      %vm706 = vmor %vm704, %vm705
      %v707 = vsel %vm706, %v699, %v703
      %v708 = vand.u32 2147483647, %v678
      %vm709 = vcmp.eq.f32.partialorder %v708, 8.507059e+37
      %v710 = vand.u32 %v678, 2147483648
      %v711 = vor.u32 1.1754944e-38, %v710
      %v712 = vsel %vm709, %v711, %v707
      %v713 = vrcp.pop %v681
      %v714 = vmul.f32 %v681, %v713
      %v715 = vsub.f32 1.0, %v714
      %v716 = vmul.f32 %v713, %v715
      %v717 = vadd.f32 %v713, %v716
      %vm718 = vweird.f32 %v681
      %vm719 = vweird.f32 %v713
      %vm720 = vmor %vm718, %vm719
      %v721 = vsel %vm720, %v713, %v717
      %v722 = vand.u32 2147483647, %v681
      %vm723 = vcmp.eq.f32.partialorder %v722, 8.507059e+37
      %v724 = vand.u32 %v681, 2147483648
      %v725 = vor.u32 1.1754944e-38, %v724
      %v726 = vsel %vm723, %v725, %v721
      %v727 = vrcp.pop %v684
      %v728 = vmul.f32 %v684, %v727
      %v729 = vsub.f32 1.0, %v728
      %v730 = vmul.f32 %v727, %v729
      %v731 = vadd.f32 %v727, %v730
      %vm732 = vweird.f32 %v684
      %vm733 = vweird.f32 %v727
      %vm734 = vmor %vm732, %vm733
      %v735 = vsel %vm734, %v727, %v731
      %v736 = vand.u32 2147483647, %v684
      %vm737 = vcmp.eq.f32.partialorder %v736, 8.507059e+37
      %v738 = vand.u32 %v684, 2147483648
      %v739 = vor.u32 1.1754944e-38, %v738
      %v740 = vsel %vm737, %v739, %v735
      %v741 = vmul.f32 %v666, %v698
      %v742 = vmul.f32 %v668, %v712
      %v743 = vmul.f32 %v670, %v726
      %v744 = vmul.f32 %v672, %v740
      %v745 = vmax.f32 %v741, 1e-10
      %v746 = vmax.f32 %v742, 1e-10
      %v747 = vmax.f32 %v743, 1e-10
      %v748 = vmax.f32 %v744, 1e-10
      %v749 = vmin.f32 %v745, 1.0
      %v750 = vmin.f32 %v746, 1.0
      %v751 = vmin.f32 %v747, 1.0
      %v752 = vmin.f32 %v748, 1.0
      %753 = vst.msk [vmem:[%s329] sm:$0xff] %vm648, %v749
      %754 = vst.msk [vmem:[%s329 + $0x8] sm:$0xff] %vm648, %v750
      %755 = vst.msk [vmem:[%s329 + $0x10] sm:$0xff] %vm648, %v751
      %756 = vst.msk [vmem:[%s329 + $0x18] sm:$0xff] %vm648, %v752
      %s757 = smul.u32 4, %s19
      %p758 = scmp.lt.s32.totalorder %s757, 7
      %s759 = scalar_select %p758, %s757, 7
      %s760 = smul.addr %s759, 8
      %s761 = scalar_lea.vmem %s8, %s760
      // Predicated region
      $region53: #{tpu_custom_call.1} parent=51 // pred_check
        %p762 = pneg %p215
      $region54: #{tpu_custom_call.1} parent=51 // pred_check_branch
        %764 = sbr.rel (%p762) target = $region56
      $region55: #{tpu_custom_call.1} parent=51 // pred_region
        %s765 = smul.u32 4, %s19
      $region56: #{tpu_custom_call.1} parent=51 // pred_fallthru
        _
    $region52: #{tpu_custom_call.1} parent=5 // pred_fallthru
      _
    %p766 = scmp.le.s32.totalorder 2, %s14
    // Predicated region
    $region57: #{tpu_custom_call.1} parent=5 // pred_check
      %p767 = pneg %p766
    $region58: #{tpu_custom_call.1} parent=5 // pred_check_branch
      %769 = sbr.rel (%p767) target = $region60
    $region59: #{tpu_custom_call.1} parent=5 // pred_region
      %s770 = ssub.s32 %s14, 2
      // Predicated region
      $region61: #{tpu_custom_call.1} parent=59 // pred_check
        %p771 = pneg %p221
      $region62: #{tpu_custom_call.1} parent=59 // pred_check_branch
        %773 = sbr.rel (%p771) target = $region64
      $region63: #{tpu_custom_call.1} parent=59 // pred_region
        %s774 = smul.u32 4, %s20
        %p775 = scmp.lt.s32.totalorder %s774, 7
        %s776 = scalar_select %p775, %s774, 7
        %s777 = smul.addr %s776, 8
        %s778 = scalar_lea.vmem %s8, %s777
      $region64: #{tpu_custom_call.1} parent=59 // pred_fallthru
        _
    $region60: #{tpu_custom_call.1} parent=5 // pred_fallthru
      _
  $region6: #{tpu_custom_call.1} parent=0 // loop_footer
    %s18 = sadd.s32 1, %s14
  $region7: #{tpu_custom_call.1} parent=0 // loop_footer_branch
    %13 = sbr.rel target = $region3
  $region8: #{tpu_custom_call.1} parent=0 // loop_exit
    _

// kernel: tpu_custom_call.1
$region0: #{tpu_custom_call.1}
  #allocation0 [shape = 'u32[]', space=smem, size = 0x4, offset = 0x4, fixed_abs, tag = 'smem constant byte address 0x4 - core index']
  #allocation1 [shape = 'u32[72,128]{1,0:T(1,128)}', space=vmem, size = 0x9000, scoped, tag = 'internal scratch']
  %s0 = inlined_call_operand.vmem [shape: f32[64,16], index: 0, kind: input, shape index: {}]
  %s1 = inlined_call_operand.vmem [shape: f32[64,8], index: 1, kind: input, shape index: {}]
  %s2 = inlined_call_operand.vmem [shape: bf16[24,32], index: 2, kind: input, shape index: {}]
  %s3 = inlined_call_operand.vmem [shape: f32[1,32], index: 3, kind: input, shape index: {}]
  %s4 = inlined_call_operand.vmem [shape: bf16[32,32], index: 4, kind: input, shape index: {}]
  %s5 = inlined_call_operand.vmem [shape: f32[1,32], index: 5, kind: input, shape index: {}]
  %s6 = inlined_call_operand.vmem [shape: bf16[32,10], index: 6, kind: input, shape index: {}]
  %s7 = inlined_call_operand.vmem [shape: f32[1,10], index: 7, kind: input, shape index: {}]
  %s8 = inlined_call_operand.vmem [shape: f32[64,10], index: 8, kind: output, shape index: {}]
  %s9 = sld [smem:[#allocation0]]
  $region65: #{tpu_custom_call.1} parent=0
    _
  %s11 = ssub.s32 1, %s9
  %s12 = scalar_select 0, %s11, %s9
  loop: start=0, step=1, limit=4
  $region2: #{tpu_custom_call.1} parent=0 // loop_pre_header
    _
  $region3: #{tpu_custom_call.1} parent=0 // loop_header
    %s14 = sphi 0, %s18
    %p15 = scmp.ge.s32.totalorder %s14, 4
    %s24 = sphi 0, %s26
    %s27 = sphi 0, %s24
    %s28 = sphi 0, %s27
    %s44 = sphi 0, %s28
    %s50 = sphi 0, %s52
    %s53 = sphi 0, %s50
    %s54 = sphi 0, %s53
    %s70 = sphi 0, %s54
    %s74 = sphi 0, %s74
    %s76 = sphi 0, %s74
    %s77 = sphi 0, %s76
    %s91 = sphi 0, %s77
    %s95 = sphi 0, %s95
    %s97 = sphi 0, %s95
    %s98 = sphi 0, %s97
    %s112 = sphi 0, %s98
    %s116 = sphi 0, %s116
    %s118 = sphi 0, %s116
    %s119 = sphi 0, %s118
    %s133 = sphi 0, %s119
    %s137 = sphi 0, %s137
    %s139 = sphi 0, %s137
    %s140 = sphi 0, %s139
    %s154 = sphi 0, %s140
    %s158 = sphi 0, %s158
    %s160 = sphi 0, %s158
    %s161 = sphi 0, %s160
    %s175 = sphi 0, %s161
    %s179 = sphi 0, %s179
    %s181 = sphi 0, %s179
    %s182 = sphi 0, %s181
    %s196 = sphi 0, %s182
    %s202 = sphi 0, %s204
    %s205 = sphi 0, %s202
    %s206 = sphi 0, %s205
    %s222 = sphi 0, %s206
  $region4: #{tpu_custom_call.1} parent=0 // loop_header_branch
    %17 = sbr.rel (%p15) target = $region8
  $region5: #{tpu_custom_call.1} parent=0 // loop_body
    %s19 = ssub.s32 %s14, 1
    %s20 = ssub.s32 %s14, 2
    %s21 = sadd.s32 %s14, 1
    %s22 = ssub.s32 %s14, %s21
    %p23 = scmp.eq.s32.totalorder %s22, 0
    %s25 = sadd.s32 %s24, 1
    %s26 = scalar_select %p23, %s24, %s25
    %p29 = pneg %p23
    %p30 = scmp.eq.s32.totalorder %s14, 1
    %p31 = por %p29, %p30
    %p32 = scmp.ne.s32.totalorder %s24, %s27
    %p33 = scmp.eq.s32.totalorder %s14, 0
    %p34 = por %p32, %p33
    %p35 = scmp.ne.s32.totalorder %s24, %s27
    %p36 = scmp.eq.s32.totalorder %s19, 1
    %p37 = por %p35, %p36
    %p38 = scmp.ne.s32.totalorder %s27, %s28
    %p39 = scmp.eq.s32.totalorder %s19, 0
    %p40 = por %p38, %p39
    %p41 = scmp.ne.s32.totalorder %s27, %s28
    %p42 = scmp.eq.s32.totalorder %s20, 1
    %p43 = por %p41, %p42
    %p45 = scmp.ne.s32.totalorder %s28, %s44
    %p46 = scmp.eq.s32.totalorder %s20, 0
    %p47 = por %p45, %p46
    %s48 = ssub.s32 %s14, %s21
    %p49 = scmp.eq.s32.totalorder %s48, 0
    %s51 = sadd.s32 %s50, 1
    %s52 = scalar_select %p49, %s50, %s51
    %p55 = pneg %p49
    %p56 = scmp.eq.s32.totalorder %s14, 1
    %p57 = por %p55, %p56
    %p58 = scmp.ne.s32.totalorder %s50, %s53
    %p59 = scmp.eq.s32.totalorder %s14, 0
    %p60 = por %p58, %p59
    %p61 = scmp.ne.s32.totalorder %s50, %s53
    %p62 = scmp.eq.s32.totalorder %s19, 1
    %p63 = por %p61, %p62
    %p64 = scmp.ne.s32.totalorder %s53, %s54
    %p65 = scmp.eq.s32.totalorder %s19, 0
    %p66 = por %p64, %p65
    %p67 = scmp.ne.s32.totalorder %s53, %s54
    %p68 = scmp.eq.s32.totalorder %s20, 1
    %p69 = por %p67, %p68
    %p71 = scmp.ne.s32.totalorder %s54, %s70
    %p72 = scmp.eq.s32.totalorder %s20, 0
    %p73 = por %p71, %p72
    %s75 = sadd.s32 %s74, 1
    %p78 = scmp.eq.s32.totalorder %s14, 1
    %p79 = scmp.ne.s32.totalorder %s74, %s76
    %p80 = scmp.eq.s32.totalorder %s14, 0
    %p81 = por %p79, %p80
    %p82 = scmp.ne.s32.totalorder %s74, %s76
    %p83 = scmp.eq.s32.totalorder %s19, 1
    %p84 = por %p82, %p83
    %p85 = scmp.ne.s32.totalorder %s76, %s77
    %p86 = scmp.eq.s32.totalorder %s19, 0
    %p87 = por %p85, %p86
    %p88 = scmp.ne.s32.totalorder %s76, %s77
    %p89 = scmp.eq.s32.totalorder %s20, 1
    %p90 = por %p88, %p89
    %p92 = scmp.ne.s32.totalorder %s77, %s91
    %p93 = scmp.eq.s32.totalorder %s20, 0
    %p94 = por %p92, %p93
    %s96 = sadd.s32 %s95, 1
    %p99 = scmp.eq.s32.totalorder %s14, 1
    %p100 = scmp.ne.s32.totalorder %s95, %s97
    %p101 = scmp.eq.s32.totalorder %s14, 0
    %p102 = por %p100, %p101
    %p103 = scmp.ne.s32.totalorder %s95, %s97
    %p104 = scmp.eq.s32.totalorder %s19, 1
    %p105 = por %p103, %p104
    %p106 = scmp.ne.s32.totalorder %s97, %s98
    %p107 = scmp.eq.s32.totalorder %s19, 0
    %p108 = por %p106, %p107
    %p109 = scmp.ne.s32.totalorder %s97, %s98
    %p110 = scmp.eq.s32.totalorder %s20, 1
    %p111 = por %p109, %p110
    %p113 = scmp.ne.s32.totalorder %s98, %s112
    %p114 = scmp.eq.s32.totalorder %s20, 0
    %p115 = por %p113, %p114
    %s117 = sadd.s32 %s116, 1
    %p120 = scmp.eq.s32.totalorder %s14, 1
    %p121 = scmp.ne.s32.totalorder %s116, %s118
    %p122 = scmp.eq.s32.totalorder %s14, 0
    %p123 = por %p121, %p122
    %p124 = scmp.ne.s32.totalorder %s116, %s118
    %p125 = scmp.eq.s32.totalorder %s19, 1
    %p126 = por %p124, %p125
    %p127 = scmp.ne.s32.totalorder %s118, %s119
    %p128 = scmp.eq.s32.totalorder %s19, 0
    %p129 = por %p127, %p128
    %p130 = scmp.ne.s32.totalorder %s118, %s119
    %p131 = scmp.eq.s32.totalorder %s20, 1
    %p132 = por %p130, %p131
    %p134 = scmp.ne.s32.totalorder %s119, %s133
    %p135 = scmp.eq.s32.totalorder %s20, 0
    %p136 = por %p134, %p135
    %s138 = sadd.s32 %s137, 1
    %p141 = scmp.eq.s32.totalorder %s14, 1
    %p142 = scmp.ne.s32.totalorder %s137, %s139
    %p143 = scmp.eq.s32.totalorder %s14, 0
    %p144 = por %p142, %p143
    %p145 = scmp.ne.s32.totalorder %s137, %s139
    %p146 = scmp.eq.s32.totalorder %s19, 1
    %p147 = por %p145, %p146
    %p148 = scmp.ne.s32.totalorder %s139, %s140
    %p149 = scmp.eq.s32.totalorder %s19, 0
    %p150 = por %p148, %p149
    %p151 = scmp.ne.s32.totalorder %s139, %s140
    %p152 = scmp.eq.s32.totalorder %s20, 1
    %p153 = por %p151, %p152
    %p155 = scmp.ne.s32.totalorder %s140, %s154
    %p156 = scmp.eq.s32.totalorder %s20, 0
    %p157 = por %p155, %p156
    %s159 = sadd.s32 %s158, 1
    %p162 = scmp.eq.s32.totalorder %s14, 1
    %p163 = scmp.ne.s32.totalorder %s158, %s160
    %p164 = scmp.eq.s32.totalorder %s14, 0
    %p165 = por %p163, %p164
    %p166 = scmp.ne.s32.totalorder %s158, %s160
    %p167 = scmp.eq.s32.totalorder %s19, 1
    %p168 = por %p166, %p167
    %p169 = scmp.ne.s32.totalorder %s160, %s161
    %p170 = scmp.eq.s32.totalorder %s19, 0
    %p171 = por %p169, %p170
    %p172 = scmp.ne.s32.totalorder %s160, %s161
    %p173 = scmp.eq.s32.totalorder %s20, 1
    %p174 = por %p172, %p173
    %p176 = scmp.ne.s32.totalorder %s161, %s175
    %p177 = scmp.eq.s32.totalorder %s20, 0
    %p178 = por %p176, %p177
    %s180 = sadd.s32 %s179, 1
    %p183 = scmp.eq.s32.totalorder %s14, 1
    %p184 = scmp.ne.s32.totalorder %s179, %s181
    %p185 = scmp.eq.s32.totalorder %s14, 0
    %p186 = por %p184, %p185
    %p187 = scmp.ne.s32.totalorder %s179, %s181
    %p188 = scmp.eq.s32.totalorder %s19, 1
    %p189 = por %p187, %p188
    %p190 = scmp.ne.s32.totalorder %s181, %s182
    %p191 = scmp.eq.s32.totalorder %s19, 0
    %p192 = por %p190, %p191
    %p193 = scmp.ne.s32.totalorder %s181, %s182
    %p194 = scmp.eq.s32.totalorder %s20, 1
    %p195 = por %p193, %p194
    %p197 = scmp.ne.s32.totalorder %s182, %s196
    %p198 = scmp.eq.s32.totalorder %s20, 0
    %p199 = por %p197, %p198
    %s200 = ssub.s32 %s14, %s21
    %p201 = scmp.eq.s32.totalorder %s200, 0
    %s203 = sadd.s32 %s202, 1
    %s204 = scalar_select %p201, %s202, %s203
    %p207 = pneg %p201
    %p208 = scmp.eq.s32.totalorder %s14, 1
    %p209 = por %p207, %p208
    %p210 = scmp.ne.s32.totalorder %s202, %s205
    %p211 = scmp.eq.s32.totalorder %s14, 0
    %p212 = por %p210, %p211
    %p213 = scmp.ne.s32.totalorder %s202, %s205
    %p214 = scmp.eq.s32.totalorder %s19, 1
    %p215 = por %p213, %p214
    %p216 = scmp.ne.s32.totalorder %s205, %s206
    %p217 = scmp.eq.s32.totalorder %s19, 0
    %p218 = por %p216, %p217
    %p219 = scmp.ne.s32.totalorder %s205, %s206
    %p220 = scmp.eq.s32.totalorder %s20, 1
    %p221 = por %p219, %p220
    %p223 = scmp.ne.s32.totalorder %s206, %s222
    %p224 = scmp.eq.s32.totalorder %s20, 0
    %p225 = por %p223, %p224
    %p226 = scmp.le.s32.totalorder 1, %s14
    %p227 = scmp.lt.s32.totalorder %s14, 3
    %p228 = pnand %p226, %p227
    %p229 = pneg %p228
    // Predicated region
    $region9: #{tpu_custom_call.1} parent=5 // pred_check
      _
    $region10: #{tpu_custom_call.1} parent=5 // pred_check_branch
      %231 = sbr.rel (%p228) target = $region12
    $region11: #{tpu_custom_call.1} parent=5 // pred_region
      %s232 = ssub.s32 %s14, 1
      // Predicated region
      $region13: #{tpu_custom_call.1} parent=11 // pred_check
        %p233 = pneg %p87
      $region14: #{tpu_custom_call.1} parent=11 // pred_check_branch
        %235 = sbr.rel (%p233) target = $region16
      $region15: #{tpu_custom_call.1} parent=11 // pred_region
        _
      $region16: #{tpu_custom_call.1} parent=11 // pred_fallthru
        _
      // Predicated region
      $region17: #{tpu_custom_call.1} parent=11 // pred_check
        %p236 = pneg %p108
      $region18: #{tpu_custom_call.1} parent=11 // pred_check_branch
        %238 = sbr.rel (%p236) target = $region20
      $region19: #{tpu_custom_call.1} parent=11 // pred_region
        _
      $region20: #{tpu_custom_call.1} parent=11 // pred_fallthru
        _
      // Predicated region
      $region21: #{tpu_custom_call.1} parent=11 // pred_check
        %p239 = pneg %p129
      $region22: #{tpu_custom_call.1} parent=11 // pred_check_branch
        %241 = sbr.rel (%p239) target = $region24
      $region23: #{tpu_custom_call.1} parent=11 // pred_region
        _
      $region24: #{tpu_custom_call.1} parent=11 // pred_fallthru
        _
      // Predicated region
      $region25: #{tpu_custom_call.1} parent=11 // pred_check
        %p242 = pneg %p150
      $region26: #{tpu_custom_call.1} parent=11 // pred_check_branch
        %244 = sbr.rel (%p242) target = $region28
      $region27: #{tpu_custom_call.1} parent=11 // pred_region
        _
      $region28: #{tpu_custom_call.1} parent=11 // pred_fallthru
        _
      // Predicated region
      $region29: #{tpu_custom_call.1} parent=11 // pred_check
        %p245 = pneg %p171
      $region30: #{tpu_custom_call.1} parent=11 // pred_check_branch
        %247 = sbr.rel (%p245) target = $region32
      $region31: #{tpu_custom_call.1} parent=11 // pred_region
        _
      $region32: #{tpu_custom_call.1} parent=11 // pred_fallthru
        _
      // Predicated region
      $region33: #{tpu_custom_call.1} parent=11 // pred_check
        %p248 = pneg %p192
      $region34: #{tpu_custom_call.1} parent=11 // pred_check_branch
        %250 = sbr.rel (%p248) target = $region36
      $region35: #{tpu_custom_call.1} parent=11 // pred_region
        _
      $region36: #{tpu_custom_call.1} parent=11 // pred_fallthru
        _
    $region12: #{tpu_custom_call.1} parent=5 // pred_fallthru
      _
    %p251 = scmp.lt.s32.totalorder %s14, 2
    // Predicated region
    $region37: #{tpu_custom_call.1} parent=5 // pred_check
      %p252 = pneg %p251
    $region38: #{tpu_custom_call.1} parent=5 // pred_check_branch
      %254 = sbr.rel (%p252) target = $region40
    $region39: #{tpu_custom_call.1} parent=5 // pred_region
      // Predicated region
      $region41: #{tpu_custom_call.1} parent=39 // pred_check
        %p255 = pneg %p34
      $region42: #{tpu_custom_call.1} parent=39 // pred_check_branch
        %257 = sbr.rel (%p255) target = $region44
      $region43: #{tpu_custom_call.1} parent=39 // pred_region
        %s258 = smul.u32 4, %s14
        %p259 = scmp.lt.s32.totalorder %s258, 7
        %s260 = scalar_select %p259, %s258, 7
        %s261 = smul.addr %s260, 8
        %s262 = scalar_lea.vmem %s0, %s261
        %s263 = smul.u32 4, %s14
      $region44: #{tpu_custom_call.1} parent=39 // pred_fallthru
        _
      // Predicated region
      $region45: #{tpu_custom_call.1} parent=39 // pred_check
        %p264 = pneg %p60
      $region46: #{tpu_custom_call.1} parent=39 // pred_check_branch
        %266 = sbr.rel (%p264) target = $region48
      $region47: #{tpu_custom_call.1} parent=39 // pred_region
        %s267 = smul.u32 4, %s14
        %p268 = scmp.lt.s32.totalorder %s267, 7
        %s269 = scalar_select %p268, %s267, 7
        %s270 = smul.addr %s269, 8
        %s271 = scalar_lea.vmem %s1, %s270
        %s272 = smul.u32 4, %s14
      $region48: #{tpu_custom_call.1} parent=39 // pred_fallthru
        _
    $region40: #{tpu_custom_call.1} parent=5 // pred_fallthru
      _
    %p273 = scmp.le.s32.totalorder 1, %s14
    %p274 = scmp.lt.s32.totalorder %s14, 3
    %p275 = pnand %p273, %p274
    %p276 = pneg %p275
    // Predicated region
    $region49: #{tpu_custom_call.1} parent=5 // pred_check
      _
    $region50: #{tpu_custom_call.1} parent=5 // pred_check_branch
      %278 = sbr.rel (%p275) target = $region52
    $region51: #{tpu_custom_call.1} parent=5 // pred_region
      %s279 = ssub.s32 %s14, 1
      %s280 = smul.u32 4, %s19
      %p281 = scmp.lt.s32.totalorder %s280, 7
      %s282 = scalar_select %p281, %s280, 7
      %s283 = smul.addr %s282, 8
      %s284 = scalar_lea.vmem %s0, %s283
      %p285 = pneg %p40
      %p286 = pneg %p37
      %s287 = smul.u32 4, %s19
      %p288 = scmp.lt.s32.totalorder %s287, 7
      %s289 = scalar_select %p288, %s287, 7
      %s290 = smul.addr %s289, 8
      %s291 = scalar_lea.vmem %s1, %s290
      %p292 = pneg %p66
      %p293 = pneg %p63
      %p294 = pneg %p87
      %p295 = pneg %p84
      %p296 = pneg %p108
      %p297 = pneg %p105
      %p298 = pneg %p129
      %p299 = pneg %p126
      %p300 = pneg %p150
      %p301 = pneg %p147
      %p302 = pneg %p171
      %p303 = pneg %p168
      %p304 = pneg %p192
      %p305 = pneg %p189
      %p306 = pneg %p218
      %p307 = pneg %p215
      %s308 = smul.u32 4, %s19
      %p309 = scmp.lt.s32.totalorder %s308, 7
      %s310 = scalar_select %p309, %s308, 7
      %s311 = smul.addr %s310, 8
      %s312 = scalar_lea.vmem %s8, %s311
      %s313 = smul.u32 4, %s19
      %p314 = scmp.lt.s32.totalorder %s313, 7
      %s315 = scalar_select %p314, %s313, 7
      %s316 = smul.addr %s315, 8
      %s317 = scalar_lea.vmem %s0, %s316
      %s318 = smul.u32 4, %s19
      %s319 = smul.u32 4, %s19
      %p320 = scmp.lt.s32.totalorder %s319, 7
      %s321 = scalar_select %p320, %s319, 7
      %s322 = smul.addr %s321, 8
      %s323 = scalar_lea.vmem %s1, %s322
      %s324 = smul.u32 4, %s19
      %s325 = smul.u32 4, %s19
      %p326 = scmp.lt.s32.totalorder %s325, 7
      %s327 = scalar_select %p326, %s325, 7
      %s328 = smul.addr %s327, 8
      %s329 = scalar_lea.vmem %s8, %s328
      %s330 = smul.u32 4, %s19
      %v332 = vld [vmem:[%s317] sm:$0xff]
      %v333 = vld [vmem:[%s317 + $0x8] sm:$0xff]
      %v334 = vld [vmem:[%s317 + $0x10] sm:$0xff]
      %v335 = vld [vmem:[%s317 + $0x18] sm:$0xff]
      %v336 = vld [vmem:[%s323] sm:$0xff]
      %v337 = vld [vmem:[%s323 + $0x8] sm:$0xff]
      %v338 = vld [vmem:[%s323 + $0x10] sm:$0xff]
      %v339 = vld [vmem:[%s323 + $0x18] sm:$0xff]
      %344 = vrot.lane.b32.xlu0 %v336, 16
      %v345 = vpop.permute.xlu0 %344
      %346 = vrot.lane.b32.xlu0 %v337, 16
      %v347 = vpop.permute.xlu0 %346
      %348 = vrot.lane.b32.xlu0 %v338, 16
      %v349 = vpop.permute.xlu0 %348
      %350 = vrot.lane.b32.xlu0 %v339, 16
      %v351 = vpop.permute.xlu0 %350
      %vm356 = vcmask 130048
      %v357 = vsel %vm356, %v332, %v345
      %v358 = vsel %vm356, %v333, %v347
      %v359 = vsel %vm356, %v334, %v349
      %v360 = vsel %vm356, %v335, %v351
      %v361 = vpack.c.bf16 %v358, %v357
      %v362 = vpack.c.bf16 %v360, %v359
      %v363 = vld [vmem:[%s2] sm:$0xf]
      %v364 = vld [vmem:[%s2 + $0x4] sm:$0xf]
      %v365 = vld [vmem:[%s2 + $0x8] sm:$0xf]
      %v366 = vld [vmem:[%s3] sm:$0x1]
      %v368 = vperm.slane %v366, 0
      %v373 = vunpack.c.l.b16 %v363
      %v374 = vunpack.c.l.b16 %v364
      %v375 = vunpack.c.l.b16 %v365
      %v376 = vpack.c.b16 %v374, %v373
      %v377 = vpack.c.b16 %v375, %v375
      %vm379 = vcmask 195584
      %v381 = vsel %vm379, %v361, 0
      %v384 = vsel %vm379, %v362, 0
      %vm386 = vcmask 1043456
      %v388 = vsel %vm386, %v377, 0
      %390 = vmatpush.bf16.msra.mxu0 0
      %391 = vmatpush.bf16.msra.mxu0 0
      %392 = vmatpush.bf16.msra.mxu0 0
      %393 = vmatpush.bf16.msra.mxu0 0
      %394 = vmatpush.bf16.msra.mxu0 0
      %395 = vmatpush.bf16.msra.mxu0 0
      %396 = vmatpush.bf16.msra.mxu0 %v388
      %397 = vmatpush.bf16.msra.mxu0 %v376
      %398 = vmatmul.bf16.gmra.mxu0 %v381
      %v399 = vpop.f32.mrf.mxu0
      %v400 = vadd.f32 %v368, %v399
      %v401 = vpop.f32.mrf.mxu0
      %v402 = vadd.f32 %v368, %v401
      %403 = vmatmul.bf16.gmra.mxu0 %v384
      %v404 = vpop.f32.mrf.mxu0
      %v405 = vadd.f32 %v368, %v404
      %v406 = vpop.f32.mrf.mxu0
      %v407 = vadd.f32 %v368, %v406
      %408 = vdwg.mxu0
      %v409 = vmax.f32 %v400, 0.0
      %v410 = vmax.f32 %v402, 0.0
      %v411 = vmax.f32 %v405, 0.0
      %v412 = vmax.f32 %v407, 0.0
      %vm413 = vcmp.ne.f32.partialorder %v400, %v400
      %vm414 = vcmp.ne.f32.partialorder %v402, %v402
      %vm415 = vcmp.ne.f32.partialorder %v405, %v405
      %vm416 = vcmp.ne.f32.partialorder %v407, %v407
      %v417 = vadd.f32 %v400, 0.0
      %v418 = vadd.f32 %v402, 0.0
      %v419 = vadd.f32 %v405, 0.0
      %v420 = vadd.f32 %v407, 0.0
      %v421 = vand.u32 2147483647, %v400
      %v422 = vand.u32 2147483647, %v402
      %v423 = vand.u32 2147483647, %v405
      %v424 = vand.u32 2147483647, %v407
      %v425 = vsub.f32 0.0, %v421
      %v426 = vsub.f32 0.0, %v422
      %v427 = vsub.f32 0.0, %v423
      %v428 = vsub.f32 0.0, %v424
      %v429 = vmul.f32 %v425, 1.442695
      %v430 = vpow.pop %v429
      %v431 = vmul.f32 %v426, 1.442695
      %v432 = vpow.pop %v431
      %v433 = vmul.f32 %v427, 1.442695
      %v434 = vpow.pop %v433
      %v435 = vmul.f32 %v428, 1.442695
      %v436 = vpow.pop %v435
      %v437 = vadd.f32 %v430, 1.0
      %v438 = vlog2.pop %v437
      %v439 = vmul.f32 %v438, 0.6931472
      %v440 = vmul.f32 -0.5, %v430
      %v441 = vadd.f32 %v440, 1.0
      %v442 = vmul.f32 %v441, %v430
      %v443 = vand.u32 2147483647, %v430
      %vm444 = vcmp.lt.f32.partialorder %v443, 0.0004427343
      %v445 = vsel %vm444, %v442, %v439
      %v446 = vadd.f32 %v432, 1.0
      %v447 = vlog2.pop %v446
      %v448 = vmul.f32 %v447, 0.6931472
      %v449 = vmul.f32 -0.5, %v432
      %v450 = vadd.f32 %v449, 1.0
      %v451 = vmul.f32 %v450, %v432
      %v452 = vand.u32 2147483647, %v432
      %vm453 = vcmp.lt.f32.partialorder %v452, 0.0004427343
      %v454 = vsel %vm453, %v451, %v448
      %v455 = vadd.f32 %v434, 1.0
      %v456 = vlog2.pop %v455
      %v457 = vmul.f32 %v456, 0.6931472
      %v458 = vmul.f32 -0.5, %v434
      %v459 = vadd.f32 %v458, 1.0
      %v460 = vmul.f32 %v459, %v434
      %v461 = vand.u32 2147483647, %v434
      %vm462 = vcmp.lt.f32.partialorder %v461, 0.0004427343
      %v463 = vsel %vm462, %v460, %v457
      %v464 = vadd.f32 %v436, 1.0
      %v465 = vlog2.pop %v464
      %v466 = vmul.f32 %v465, 0.6931472
      %v467 = vmul.f32 -0.5, %v436
      %v468 = vadd.f32 %v467, 1.0
      %v469 = vmul.f32 %v468, %v436
      %v470 = vand.u32 2147483647, %v436
      %vm471 = vcmp.lt.f32.partialorder %v470, 0.0004427343
      %v472 = vsel %vm471, %v469, %v466
      %v473 = vadd.f32 %v409, %v445
      %v474 = vadd.f32 %v410, %v454
      %v475 = vadd.f32 %v411, %v463
      %v476 = vadd.f32 %v412, %v472
      %v477 = vsel %vm413, %v417, %v473
      %v478 = vsel %vm414, %v418, %v474
      %v479 = vsel %vm415, %v419, %v475
      %v480 = vsel %vm416, %v420, %v476
      %v481 = vld [vmem:[%s4] sm:$0xf]
      %v482 = vld [vmem:[%s4 + $0x4] sm:$0xf]
      %v483 = vld [vmem:[%s4 + $0x8] sm:$0xf]
      %v484 = vld [vmem:[%s4 + $0xc] sm:$0xf]
      %v485 = vld [vmem:[%s5] sm:$0x1]
      %v486 = vpack.c.bf16 %v478, %v477
      %v487 = vpack.c.bf16 %v480, %v479
      %v489 = vperm.slane %v485, 0
      %v495 = vunpack.c.l.b16 %v481
      %v496 = vunpack.c.l.b16 %v482
      %v497 = vunpack.c.l.b16 %v483
      %v498 = vunpack.c.l.b16 %v484
      %v499 = vpack.c.b16 %v496, %v495
      %v500 = vpack.c.b16 %v498, %v497
      %vm503 = vcmask 261120
      %v505 = vsel %vm503, %v486, 0
      %v508 = vsel %vm503, %v487, 0
      %510 = vmatpush.bf16.msra.mxu0 0
      %511 = vmatpush.bf16.msra.mxu0 0
      %512 = vmatpush.bf16.msra.mxu0 0
      %513 = vmatpush.bf16.msra.mxu0 0
      %514 = vmatpush.bf16.msra.mxu0 0
      %515 = vmatpush.bf16.msra.mxu0 0
      %516 = vmatpush.bf16.msra.mxu0 %v500
      %517 = vmatpush.bf16.msra.mxu0 %v499
      %518 = vmatmul.bf16.gmra.mxu0 %v505
      %v519 = vpop.f32.mrf.mxu0
      %v520 = vadd.f32 %v489, %v519
      %v521 = vpop.f32.mrf.mxu0
      %v522 = vadd.f32 %v489, %v521
      %523 = vmatmul.bf16.gmra.mxu0 %v508
      %v524 = vpop.f32.mrf.mxu0
      %v525 = vadd.f32 %v489, %v524
      %v526 = vpop.f32.mrf.mxu0
      %v527 = vadd.f32 %v489, %v526
      %528 = vdwg.mxu0
      %v529 = vmax.f32 %v520, 0.0
      %v530 = vmax.f32 %v522, 0.0
      %v531 = vmax.f32 %v525, 0.0
      %v532 = vmax.f32 %v527, 0.0
      %vm533 = vcmp.ne.f32.partialorder %v520, %v520
      %vm534 = vcmp.ne.f32.partialorder %v522, %v522
      %vm535 = vcmp.ne.f32.partialorder %v525, %v525
      %vm536 = vcmp.ne.f32.partialorder %v527, %v527
      %v537 = vadd.f32 %v520, 0.0
      %v538 = vadd.f32 %v522, 0.0
      %v539 = vadd.f32 %v525, 0.0
      %v540 = vadd.f32 %v527, 0.0
      %v541 = vand.u32 2147483647, %v520
      %v542 = vand.u32 2147483647, %v522
      %v543 = vand.u32 2147483647, %v525
      %v544 = vand.u32 2147483647, %v527
      %v545 = vsub.f32 0.0, %v541
      %v546 = vsub.f32 0.0, %v542
      %v547 = vsub.f32 0.0, %v543
      %v548 = vsub.f32 0.0, %v544
      %v549 = vmul.f32 %v545, 1.442695
      %v550 = vpow.pop %v549
      %v551 = vmul.f32 %v546, 1.442695
      %v552 = vpow.pop %v551
      %v553 = vmul.f32 %v547, 1.442695
      %v554 = vpow.pop %v553
      %v555 = vmul.f32 %v548, 1.442695
      %v556 = vpow.pop %v555
      %v557 = vadd.f32 %v550, 1.0
      %v558 = vlog2.pop %v557
      %v559 = vmul.f32 %v558, 0.6931472
      %v560 = vmul.f32 -0.5, %v550
      %v561 = vadd.f32 %v560, 1.0
      %v562 = vmul.f32 %v561, %v550
      %v563 = vand.u32 2147483647, %v550
      %vm564 = vcmp.lt.f32.partialorder %v563, 0.0004427343
      %v565 = vsel %vm564, %v562, %v559
      %v566 = vadd.f32 %v552, 1.0
      %v567 = vlog2.pop %v566
      %v568 = vmul.f32 %v567, 0.6931472
      %v569 = vmul.f32 -0.5, %v552
      %v570 = vadd.f32 %v569, 1.0
      %v571 = vmul.f32 %v570, %v552
      %v572 = vand.u32 2147483647, %v552
      %vm573 = vcmp.lt.f32.partialorder %v572, 0.0004427343
      %v574 = vsel %vm573, %v571, %v568
      %v575 = vadd.f32 %v554, 1.0
      %v576 = vlog2.pop %v575
      %v577 = vmul.f32 %v576, 0.6931472
      %v578 = vmul.f32 -0.5, %v554
      %v579 = vadd.f32 %v578, 1.0
      %v580 = vmul.f32 %v579, %v554
      %v581 = vand.u32 2147483647, %v554
      %vm582 = vcmp.lt.f32.partialorder %v581, 0.0004427343
      %v583 = vsel %vm582, %v580, %v577
      %v584 = vadd.f32 %v556, 1.0
      %v585 = vlog2.pop %v584
      %v586 = vmul.f32 %v585, 0.6931472
      %v587 = vmul.f32 -0.5, %v556
      %v588 = vadd.f32 %v587, 1.0
      %v589 = vmul.f32 %v588, %v556
      %v590 = vand.u32 2147483647, %v556
      %vm591 = vcmp.lt.f32.partialorder %v590, 0.0004427343
      %v592 = vsel %vm591, %v589, %v586
      %v593 = vadd.f32 %v529, %v565
      %v594 = vadd.f32 %v530, %v574
      %v595 = vadd.f32 %v531, %v583
      %v596 = vadd.f32 %v532, %v592
      %v597 = vsel %vm533, %v537, %v593
      %v598 = vsel %vm534, %v538, %v594
      %v599 = vsel %vm535, %v539, %v595
      %v600 = vsel %vm536, %v540, %v596
      %v601 = vpack.c.bf16 %v598, %v597
      %v602 = vpack.c.bf16 %v600, %v599
      %v603 = vld [vmem:[%s6] sm:$0xf]
      %v604 = vld [vmem:[%s6 + $0x4] sm:$0xf]
      %v605 = vld [vmem:[%s6 + $0x8] sm:$0xf]
      %v606 = vld [vmem:[%s6 + $0xc] sm:$0xf]
      %v607 = vld [vmem:[%s7] sm:$0x1]
      %v609 = vperm.slane %v607, 0
      %v615 = vunpack.c.l.b16 %v603
      %v616 = vunpack.c.l.b16 %v604
      %v617 = vunpack.c.l.b16 %v605
      %v618 = vunpack.c.l.b16 %v606
      %v619 = vpack.c.b16 %v616, %v615
      %v620 = vpack.c.b16 %v618, %v617
      %v624 = vsel %vm503, %v601, 0
      %v627 = vsel %vm503, %v602, 0
      %629 = vmatpush.bf16.msra.mxu0 0
      %630 = vmatpush.bf16.msra.mxu0 0
      %631 = vmatpush.bf16.msra.mxu0 0
      %632 = vmatpush.bf16.msra.mxu0 0
      %633 = vmatpush.bf16.msra.mxu0 0
      %634 = vmatpush.bf16.msra.mxu0 0
      %635 = vmatpush.bf16.msra.mxu0 %v620
      %636 = vmatpush.bf16.msra.mxu0 %v619
      %637 = vmatmul.bf16.gmra.mxu0 %v624
      %v638 = vpop.f32.mrf.mxu0
      %v639 = vadd.f32 %v609, %v638
      %v640 = vpop.f32.mrf.mxu0
      %v641 = vadd.f32 %v609, %v640
      %642 = vmatmul.bf16.gmra.mxu0 %v627
      %v643 = vpop.f32.mrf.mxu0
      %v644 = vadd.f32 %v609, %v643
      %v645 = vpop.f32.mrf.mxu0
      %v646 = vadd.f32 %v609, %v645
      %647 = vdwg.mxu0
      %vm648 = vcmask 80896
      %v649 = vsel %vm648, %v639, -inf
      %650 = vmax.xlane.f32.xlu0 %v649
      %v651 = vpop.xlane.xlu0 %650
      %v652 = vsel %vm648, %v641, -inf
      %653 = vmax.xlane.f32.xlu0 %v652
      %v654 = vpop.xlane.xlu0 %653
      %v655 = vsel %vm648, %v644, -inf
      %656 = vmax.xlane.f32.xlu0 %v655
      %v657 = vpop.xlane.xlu0 %656
      %v658 = vsel %vm648, %v646, -inf
      %659 = vmax.xlane.f32.xlu0 %v658
      %v660 = vpop.xlane.xlu0 %659
      %v661 = vsub.f32 %v639, %v651
      %v662 = vsub.f32 %v641, %v654
      %v663 = vsub.f32 %v644, %v657
      %v664 = vsub.f32 %v646, %v660
      %v665 = vmul.f32 %v661, 1.442695
      %v666 = vpow.pop %v665
      %v667 = vmul.f32 %v662, 1.442695
      %v668 = vpow.pop %v667
      %v669 = vmul.f32 %v663, 1.442695
      %v670 = vpow.pop %v669
      %v671 = vmul.f32 %v664, 1.442695
      %v672 = vpow.pop %v671
      %v673 = vsel %vm648, %v666, 0.0
      %674 = vadd.xlane.f32.xlu0 %v673
      %v675 = vpop.xlane.xlu0 %674
      %v676 = vsel %vm648, %v668, 0.0
      %677 = vadd.xlane.f32.xlu0 %v676
      %v678 = vpop.xlane.xlu0 %677
      %v679 = vsel %vm648, %v670, 0.0
      %680 = vadd.xlane.f32.xlu0 %v679
      %v681 = vpop.xlane.xlu0 %680
      %v682 = vsel %vm648, %v672, 0.0
      %683 = vadd.xlane.f32.xlu0 %v682
      %v684 = vpop.xlane.xlu0 %683
      %v685 = vrcp.pop %v675
      %v686 = vmul.f32 %v675, %v685
      %v687 = vsub.f32 1.0, %v686
      %v688 = vmul.f32 %v685, %v687
      %v689 = vadd.f32 %v685, %v688
      %vm690 = vweird.f32 %v675
      %vm691 = vweird.f32 %v685
      %vm692 = vmor %vm690, %vm691
      %v693 = vsel %vm692, %v685, %v689
      %v694 = vand.u32 2147483647, %v675
      %vm695 = vcmp.eq.f32.partialorder %v694, 8.507059e+37
      %v696 = vand.u32 %v675, 2147483648
      %v697 = vor.u32 1.1754944e-38, %v696
      %v698 = vsel %vm695, %v697, %v693
      %v699 = vrcp.pop %v678
      %v700 = vmul.f32 %v678, %v699
      %v701 = vsub.f32 1.0, %v700
      %v702 = vmul.f32 %v699, %v701
      %v703 = vadd.f32 %v699, %v702
      %vm704 = vweird.f32 %v678
      %vm705 = vweird.f32 %v699
      %vm706 = vmor %vm704, %vm705
      %v707 = vsel %vm706, %v699, %v703
      %v708 = vand.u32 2147483647, %v678
      %vm709 = vcmp.eq.f32.partialorder %v708, 8.507059e+37
      %v710 = vand.u32 %v678, 2147483648
      %v711 = vor.u32 1.1754944e-38, %v710
      %v712 = vsel %vm709, %v711, %v707
      %v713 = vrcp.pop %v681
      %v714 = vmul.f32 %v681, %v713
      %v715 = vsub.f32 1.0, %v714
      %v716 = vmul.f32 %v713, %v715
      %v717 = vadd.f32 %v713, %v716
      %vm718 = vweird.f32 %v681
      %vm719 = vweird.f32 %v713
      %vm720 = vmor %vm718, %vm719
      %v721 = vsel %vm720, %v713, %v717
      %v722 = vand.u32 2147483647, %v681
      %vm723 = vcmp.eq.f32.partialorder %v722, 8.507059e+37
      %v724 = vand.u32 %v681, 2147483648
      %v725 = vor.u32 1.1754944e-38, %v724
      %v726 = vsel %vm723, %v725, %v721
      %v727 = vrcp.pop %v684
      %v728 = vmul.f32 %v684, %v727
      %v729 = vsub.f32 1.0, %v728
      %v730 = vmul.f32 %v727, %v729
      %v731 = vadd.f32 %v727, %v730
      %vm732 = vweird.f32 %v684
      %vm733 = vweird.f32 %v727
      %vm734 = vmor %vm732, %vm733
      %v735 = vsel %vm734, %v727, %v731
      %v736 = vand.u32 2147483647, %v684
      %vm737 = vcmp.eq.f32.partialorder %v736, 8.507059e+37
      %v738 = vand.u32 %v684, 2147483648
      %v739 = vor.u32 1.1754944e-38, %v738
      %v740 = vsel %vm737, %v739, %v735
      %v741 = vmul.f32 %v666, %v698
      %v742 = vmul.f32 %v668, %v712
      %v743 = vmul.f32 %v670, %v726
      %v744 = vmul.f32 %v672, %v740
      %v745 = vmax.f32 %v741, 1e-10
      %v746 = vmax.f32 %v742, 1e-10
      %v747 = vmax.f32 %v743, 1e-10
      %v748 = vmax.f32 %v744, 1e-10
      %v749 = vmin.f32 %v745, 1.0
      %v750 = vmin.f32 %v746, 1.0
      %v751 = vmin.f32 %v747, 1.0
      %v752 = vmin.f32 %v748, 1.0
      %753 = vst.msk [vmem:[%s329] sm:$0xff] %vm648, %v749
      %754 = vst.msk [vmem:[%s329 + $0x8] sm:$0xff] %vm648, %v750
      %755 = vst.msk [vmem:[%s329 + $0x10] sm:$0xff] %vm648, %v751
      %756 = vst.msk [vmem:[%s329 + $0x18] sm:$0xff] %vm648, %v752
      %s757 = smul.u32 4, %s19
      %p758 = scmp.lt.s32.totalorder %s757, 7
      %s759 = scalar_select %p758, %s757, 7
      %s760 = smul.addr %s759, 8
      %s761 = scalar_lea.vmem %s8, %s760
      // Predicated region
      $region53: #{tpu_custom_call.1} parent=51 // pred_check
        %p762 = pneg %p215
      $region54: #{tpu_custom_call.1} parent=51 // pred_check_branch
        %764 = sbr.rel (%p762) target = $region56
      $region55: #{tpu_custom_call.1} parent=51 // pred_region
        %s765 = smul.u32 4, %s19
      $region56: #{tpu_custom_call.1} parent=51 // pred_fallthru
        _
    $region52: #{tpu_custom_call.1} parent=5 // pred_fallthru
      _
    %p766 = scmp.le.s32.totalorder 2, %s14
    // Predicated region
    $region57: #{tpu_custom_call.1} parent=5 // pred_check
      %p767 = pneg %p766
    $region58: #{tpu_custom_call.1} parent=5 // pred_check_branch
      %769 = sbr.rel (%p767) target = $region60
    $region59: #{tpu_custom_call.1} parent=5 // pred_region
      %s770 = ssub.s32 %s14, 2
      // Predicated region
      $region61: #{tpu_custom_call.1} parent=59 // pred_check
        %p771 = pneg %p221
      $region62: #{tpu_custom_call.1} parent=59 // pred_check_branch
        %773 = sbr.rel (%p771) target = $region64
      $region63: #{tpu_custom_call.1} parent=59 // pred_region
        %s774 = smul.u32 4, %s20
        %p775 = scmp.lt.s32.totalorder %s774, 7
        %s776 = scalar_select %p775, %s774, 7
        %s777 = smul.addr %s776, 8
        %s778 = scalar_lea.vmem %s8, %s777
      $region64: #{tpu_custom_call.1} parent=59 // pred_fallthru
        _
    $region60: #{tpu_custom_call.1} parent=5 // pred_fallthru
      _
  $region6: #{tpu_custom_call.1} parent=0 // loop_footer
    %s18 = sadd.s32 1, %s14
  $region7: #{tpu_custom_call.1} parent=0 // loop_footer_branch
    %13 = sbr.rel target = $region3
  $region8: #{tpu_custom_call.1} parent=0 // loop_exit
    _

</llo_original>
